<compile_context>
chip_gen: v6e
topology: v6e:2x2x1
jax: 0.10.0
libtpu: 0.0.40
codegen_flags: <defaults>
</compile_context>

<pallas_src>
import jax
import jax.numpy as jnp
from jax.experimental import pallas as pl
from jax.experimental.pallas import tpu as pltpu

L = 6          # sequence length (6 weather features)
LPAD = 8       # padded sequence length (sublane-friendly)
C1 = 64        # conv1 out channels
C2 = 128       # conv2 out channels
HID = 128      # fc hidden
NCLS = 6       # output classes
OUTPAD = 128   # lane-dense output width
MAX_TILE_N = 2048


def _cdiv(a, b):
    return (a + b - 1) // b


def _round_up(x, m):
    return _cdiv(x, m) * m


# ----------------------------------------------------------------------------
# Kernel: 4 matmuls (conv1-banded, conv2-banded, fc1, fc2), f32 accumulate,
# fused bias + ReLU + cast epilogues.
# ----------------------------------------------------------------------------
def mynet_kernel(x_ref, w1_ref, b1_ref, w2_ref, b2_ref,
                 wfc1_ref, bfc1_ref, wfc2_ref, bfc2_ref, out_ref):
    cdt = w1_ref.dtype                  # matmul operand dtype (bf16 or f32)
    x = x_ref[...]                      # (TN, LPAD), already in cdt

    # conv1 (banded matmul) + fused bias/ReLU/cast  -> (TN, L*C1)
    h = jnp.dot(x, w1_ref[...], preferred_element_type=jnp.float32)
    h = jnp.maximum(h + b1_ref[...], 0.0).astype(cdt)

    # conv2 (block-banded matmul) + fused epilogue  -> (TN, L*C2)
    h = jnp.dot(h, w2_ref[...], preferred_element_type=jnp.float32)
    h = jnp.maximum(h + b2_ref[...], 0.0).astype(cdt)

    # fc1 + fused epilogue                          -> (TN, HID)
    h = jnp.dot(h, wfc1_ref[...], preferred_element_type=jnp.float32)
    h = jnp.maximum(h + bfc1_ref[...], 0.0).astype(cdt)

    # fc2 (lane-dense, padded to 128 outputs)       -> (TN, OUTPAD) f32
    o = jnp.dot(h, wfc2_ref[...], preferred_element_type=jnp.float32)
    out_ref[...] = (o + bfc2_ref[...]).astype(out_ref.dtype)


# ----------------------------------------------------------------------------
# One-time weight preprocessing (hoisted out of the forward pass).
# Weights are stored in compute_dtype (bf16 default); biases stay f32 (tiny,
# added to the f32 accumulator).
# ----------------------------------------------------------------------------
def prepare_params(params, compute_dtype=jnp.bfloat16):
    (conv1_w, conv1_b, conv2_w, conv2_b,
     fc1_w, fc1_b, fc2_w, fc2_b) = params

    # conv1.weight (C1, 1, 3) -> banded W1big (LPAD, L*C1).
    # out1[l, c] = sum_t x[l + t - 1] * w1[t, c]   (zero outside [0, L)).
    w1 = jnp.transpose(conv1_w[:, 0, :], (1, 0))          # (3, C1)
    W1 = jnp.zeros((LPAD, L * C1), jnp.float32)
    for l_out in range(L):
        for t in range(3):
            l_in = l_out + t - 1
            if 0 <= l_in < L:
                W1 = W1.at[l_in, l_out * C1:(l_out + 1) * C1].set(w1[t])
    b1row = jnp.tile(conv1_b.astype(jnp.float32), L)[None, :]       # (1, L*C1)

    # conv2.weight (C2, C1, 3) -> block-banded W2big (L*C1, L*C2).
    w2 = jnp.transpose(conv2_w, (2, 1, 0))                # (3, C1, C2)
    W2 = jnp.zeros((L * C1, L * C2), jnp.float32)
    for l_out in range(L):
        for t in range(3):
            l_in = l_out + t - 1
            if 0 <= l_in < L:
                W2 = W2.at[l_in * C1:(l_in + 1) * C1,
                           l_out * C2:(l_out + 1) * C2].set(w2[t])
    b2row = jnp.tile(conv2_b.astype(jnp.float32), L)[None, :]       # (1, L*C2)

    # fc1.weight (HID, C2*L), PyTorch flatten index = c*L + l.
    # Our activation flatten index = l*C2 + c  ->  permute rows accordingly.
    wfc1 = jnp.transpose(fc1_w, (1, 0))                   # (C2*L, HID), row c*L+l
    wfc1 = wfc1.reshape(C2, L, HID).transpose(1, 0, 2).reshape(L * C2, HID)
    bfc1row = fc1_b.astype(jnp.float32)[None, :]                    # (1, HID)

    # fc2.weight (NCLS, HID) -> (HID, NCLS), zero-padded to 128 output lanes.
    wfc2 = jnp.transpose(fc2_w, (1, 0))                   # (HID, NCLS)
    Wfc2 = jnp.zeros((HID, OUTPAD), jnp.float32).at[:, :NCLS].set(wfc2)
    bfc2row = jnp.zeros((1, OUTPAD), jnp.float32).at[0, :NCLS].set(
        fc2_b.astype(jnp.float32))

    cd = compute_dtype
    return (W1.astype(cd), b1row, W2.astype(cd), b2row,
            wfc1.astype(cd), bfc1row, Wfc2.astype(cd), bfc2row)


# ----------------------------------------------------------------------------
# Adaptive tile policy:
#   * tiny batches (N <= 32): single step, no point splitting;
#   * otherwise an even number of >= 2 grid steps (both v7x TensorCores via
#     dimension_semantics=("parallel",), keeps the DMA pipeline busy) with
#     tile_n = round_up(cdiv(N, steps), 16), capped at MAX_TILE_N so the
#     per-step overhead is amortized but tail waste stays bounded.
# ----------------------------------------------------------------------------
def _choose_tile_n(N, max_tile=MAX_TILE_N):
    if N <= 32:
        return _round_up(max(N, 1), 16)
    n_steps = _cdiv(N, max_tile)
    n_steps = max(2, n_steps + (n_steps & 1))      # even, >= 2
    return min(max_tile, _round_up(_cdiv(N, n_steps), 16))


# ----------------------------------------------------------------------------
# Forward wrapper: pad batch, grid over batch tiles, slice result back.
# Compute dtype is inferred from the prepared weights (bf16 by default).
# ----------------------------------------------------------------------------
def mynet_forward(x_ncl, prep, *, tile_n=None):
    """x_ncl: (N, 1, L) float32 (PyTorch NCL layout)."""
    W1, b1, W2, b2, Wf1, bf1, Wf2, bf2 = prep
    compute_dtype = W1.dtype

    x = x_ncl[:, 0, :].astype(jnp.float32)                # (N, L)
    N = x.shape[0]

    if tile_n is None:
        tile_n = _choose_tile_n(N)
    tile_n = _round_up(tile_n, 16)
    n_pad = _round_up(max(N, 1), tile_n)

    # Pad batch to tile multiple and L to 8 lanes (padded rows/cols are zero;
    # the extra W1 rows are zero so padding contributes nothing).
    xp = jnp.zeros((n_pad, LPAD), jnp.float32).at[:N, :L].set(x)
    xp = xp.astype(compute_dtype)

    grid = (n_pad // tile_n,)

    def const_spec(arr):
        nd = arr.ndim
        return pl.BlockSpec(arr.shape, lambda i, _nd=nd: (0,) * _nd)

    out = pl.pallas_call(
        mynet_kernel,
        out_shape=jax.ShapeDtypeStruct((n_pad, OUTPAD), jnp.float32),
        grid=grid,
        in_specs=[
            pl.BlockSpec((tile_n, LPAD), lambda i: (i, 0)),   # x tile
            const_spec(W1), const_spec(b1),
            const_spec(W2), const_spec(b2),
            const_spec(Wf1), const_spec(bf1),
            const_spec(Wf2), const_spec(bf2),
        ],
        out_specs=pl.BlockSpec((tile_n, OUTPAD), lambda i: (i, 0)),
        compiler_params=pltpu.CompilerParams(
            dimension_semantics=("parallel",),
            vmem_limit_bytes=48 * 1024 * 1024,   # safe on v7x (64 MiB VMEM)
        ),
    )(xp, W1, b1, W2, b2, Wf1, bf1, Wf2, bf2)

    return out[:N, :NCLS]


# ----------------------------------------------------------------------------
# Pure-JAX reference with PyTorch semantics (for validation).
# ----------------------------------------------------------------------------
def mynet_reference(x_ncl, params):
    (conv1_w, conv1_b, conv2_w, conv2_b, fc1_w, fc1_b, fc2_w, fc2_b) = params
    x = x_ncl.astype(jnp.float32)                               # (N, 1, L)
    o = jax.lax.conv_general_dilated(x, conv1_w, (1,), [(1, 1)],
                                     dimension_numbers=("NCH", "OIH", "NCH"))
    o = jax.nn.relu(o + conv1_b[None, :, None])
    o = jax.lax.conv_general_dilated(o, conv2_w, (1,), [(1, 1)],
                                     dimension_numbers=("NCH", "OIH", "NCH"))
    o = jax.nn.relu(o + conv2_b[None, :, None])
    o = o.reshape(o.shape[0], -1)                               # (N, C2*L), (C,L) order
    o = jax.nn.relu(o @ fc1_w.T + fc1_b)
    return o @ fc2_w.T + fc2_b


def init_params(key):
    ks = jax.random.split(key, 8)
    s = 0.1
    conv1_w = s * jax.random.normal(ks[0], (C1, 1, 3), jnp.float32)
    conv1_b = s * jax.random.normal(ks[1], (C1,), jnp.float32)
    conv2_w = s * jax.random.normal(ks[2], (C2, C1, 3), jnp.float32)
    conv2_b = s * jax.random.normal(ks[3], (C2,), jnp.float32)
    fc1_w = s * jax.random.normal(ks[4], (HID, C2 * L), jnp.float32)
    fc1_b = s * jax.random.normal(ks[5], (HID,), jnp.float32)
    fc2_w = s * jax.random.normal(ks[6], (NCLS, HID), jnp.float32)
    fc2_b = s * jax.random.normal(ks[7], (NCLS,), jnp.float32)
    return (conv1_w, conv1_b, conv2_w, conv2_b, fc1_w, fc1_b, fc2_w, fc2_b)


if __name__ == "__main__":
    key = jax.random.PRNGKey(0)
    pkey, xkey1, xkey2 = jax.random.split(key, 3)
    params = init_params(pkey)

    # One-time weight preprocessing (hoisted out of the per-call path).
    prep_f32 = prepare_params(params, jnp.float32)     # exact-semantics path
    prep_bf16 = prepare_params(params)                 # default bf16 fast path

    # --- small batch, f32 compute: exact PyTorch semantics ---
    x_small = jax.random.normal(xkey1, (8, 1, L), jnp.float32)   # NCL input
    out = jax.block_until_ready(mynet_forward(x_small, prep_f32))
    ref = mynet_reference(x_small, params)
    assert out.shape == (8, NCLS)
    assert jnp.allclose(out, ref, atol=1e-4, rtol=1e-4), "f32 mismatch (small)"

    # --- larger batch, not a tile multiple: exercises the adaptive >=2-step
    #     grid + tail padding, default bf16 operands (f32 accumulate) ---
    x_big = jax.random.normal(xkey2, (200, 1, L), jnp.float32)
    out_big = jax.block_until_ready(mynet_forward(x_big, prep_bf16))
    ref_big = mynet_reference(x_big, params)
    assert out_big.shape == (200, NCLS)
    assert float(jnp.max(jnp.abs(out_big - ref_big))) < 5e-2, "bf16 path diverged"

    # --- same batch, f32 compute with an explicit tile size (tight check) ---
    out_big32 = jax.block_until_ready(mynet_forward(x_big, prep_f32, tile_n=64))
    assert jnp.allclose(out_big32, ref_big, atol=1e-4, rtol=1e-4), \
        "f32 mismatch (gridded)"

    print("KERNEL_OK")
</pallas_src>

<mosaic_0001>
module attributes {stable_mosaic.version = 11 : i64} {
  func.func @mynet_kernel(%arg0: i32, %arg1: memref<16x8xf32, #tpu.memory_space<vmem>>, %arg2: memref<8x384xf32, #tpu.memory_space<vmem>>, %arg3: memref<1x384xf32, #tpu.memory_space<vmem>>, %arg4: memref<384x768xf32, #tpu.memory_space<vmem>>, %arg5: memref<1x768xf32, #tpu.memory_space<vmem>>, %arg6: memref<768x128xf32, #tpu.memory_space<vmem>>, %arg7: memref<1x128xf32, #tpu.memory_space<vmem>>, %arg8: memref<128x128xf32, #tpu.memory_space<vmem>>, %arg9: memref<1x128xf32, #tpu.memory_space<vmem>>, %arg10: memref<16x128xf32, #tpu.memory_space<vmem>>) attributes {dimension_semantics = [#tpu.dimension_semantics<parallel>], iteration_bounds = array<i64: 1>, scalar_prefetch = 0 : i64, scratch_operands = 0 : i64, tpu.core_type = #tpu.core_type<tc>, window_params = [{transform_indices = @transform_0, window_bounds = array<i64: 16, 8>}, {pipeline_mode = #tpu.pipeline_mode<synchronous>, transform_indices = @transform_1, window_bounds = array<i64: 8, 384>}, {pipeline_mode = #tpu.pipeline_mode<synchronous>, transform_indices = @transform_2, window_bounds = array<i64: 1, 384>}, {pipeline_mode = #tpu.pipeline_mode<synchronous>, transform_indices = @transform_3, window_bounds = array<i64: 384, 768>}, {pipeline_mode = #tpu.pipeline_mode<synchronous>, transform_indices = @transform_4, window_bounds = array<i64: 1, 768>}, {pipeline_mode = #tpu.pipeline_mode<synchronous>, transform_indices = @transform_5, window_bounds = array<i64: 768, 128>}, {pipeline_mode = #tpu.pipeline_mode<synchronous>, transform_indices = @transform_6, window_bounds = array<i64: 1, 128>}, {pipeline_mode = #tpu.pipeline_mode<synchronous>, transform_indices = @transform_7, window_bounds = array<i64: 128, 128>}, {pipeline_mode = #tpu.pipeline_mode<synchronous>, transform_indices = @transform_8, window_bounds = array<i64: 1, 128>}, {transform_indices = @transform_9, window_bounds = array<i64: 16, 128>}]} {
    %c0 = arith.constant 0 : index
    %c0_0 = arith.constant 0 : index
    %0 = vector.load %arg1[%c0, %c0_0] : memref<16x8xf32, #tpu.memory_space<vmem>>, vector<16x8xf32>
    %c0_1 = arith.constant 0 : index
    %c0_2 = arith.constant 0 : index
    %1 = vector.load %arg2[%c0_1, %c0_2] : memref<8x384xf32, #tpu.memory_space<vmem>>, vector<8x384xf32>
    %cst = arith.constant dense<0.000000e+00> : vector<16x384xf32>
    %2 = tpu.matmul %0, %1, %cst {dimension_numbers = #tpu.dot_dimension_numbers<[1], [0], [0], [1], [0, 0, 1, 1], [], []>} : vector<16x8xf32>, vector<8x384xf32>, vector<16x384xf32> -> vector<16x384xf32>
    %c0_3 = arith.constant 0 : index
    %c0_4 = arith.constant 0 : index
    %3 = vector.load %arg3[%c0_3, %c0_4] : memref<1x384xf32, #tpu.memory_space<vmem>>, vector<1x384xf32>
    %4 = vector.broadcast %3 : vector<1x384xf32> to vector<16x384xf32>
    %5 = arith.addf %2, %4 : vector<16x384xf32>
    %cst_5 = arith.constant 0.000000e+00 : f32
    %6 = vector.broadcast %cst_5 : f32 to vector<16x384xf32>
    %7 = arith.maximumf %5, %6 : vector<16x384xf32>
    %c0_6 = arith.constant 0 : index
    %c0_7 = arith.constant 0 : index
    %8 = vector.load %arg4[%c0_6, %c0_7] : memref<384x768xf32, #tpu.memory_space<vmem>>, vector<384x768xf32>
    %cst_8 = arith.constant dense<0.000000e+00> : vector<16x768xf32>
    %9 = tpu.matmul %7, %8, %cst_8 {dimension_numbers = #tpu.dot_dimension_numbers<[1], [0], [0], [1], [0, 0, 1, 1], [], []>} : vector<16x384xf32>, vector<384x768xf32>, vector<16x768xf32> -> vector<16x768xf32>
    %c0_9 = arith.constant 0 : index
    %c0_10 = arith.constant 0 : index
    %10 = vector.load %arg5[%c0_9, %c0_10] : memref<1x768xf32, #tpu.memory_space<vmem>>, vector<1x768xf32>
    %11 = vector.broadcast %10 : vector<1x768xf32> to vector<16x768xf32>
    %12 = arith.addf %9, %11 : vector<16x768xf32>
    %cst_11 = arith.constant 0.000000e+00 : f32
    %13 = vector.broadcast %cst_11 : f32 to vector<16x768xf32>
    %14 = arith.maximumf %12, %13 : vector<16x768xf32>
    %c0_12 = arith.constant 0 : index
    %c0_13 = arith.constant 0 : index
    %15 = vector.load %arg6[%c0_12, %c0_13] : memref<768x128xf32, #tpu.memory_space<vmem>>, vector<768x128xf32>
    %cst_14 = arith.constant dense<0.000000e+00> : vector<16x128xf32>
    %16 = tpu.matmul %14, %15, %cst_14 {dimension_numbers = #tpu.dot_dimension_numbers<[1], [0], [0], [1], [0, 0, 1, 1], [], []>} : vector<16x768xf32>, vector<768x128xf32>, vector<16x128xf32> -> vector<16x128xf32>
    %c0_15 = arith.constant 0 : index
    %c0_16 = arith.constant 0 : index
    %17 = vector.load %arg7[%c0_15, %c0_16] : memref<1x128xf32, #tpu.memory_space<vmem>>, vector<1x128xf32>
    %18 = vector.broadcast %17 : vector<1x128xf32> to vector<16x128xf32>
    %19 = arith.addf %16, %18 : vector<16x128xf32>
    %cst_17 = arith.constant 0.000000e+00 : f32
    %20 = vector.broadcast %cst_17 : f32 to vector<16x128xf32>
    %21 = arith.maximumf %19, %20 : vector<16x128xf32>
    %c0_18 = arith.constant 0 : index
    %c0_19 = arith.constant 0 : index
    %22 = vector.load %arg8[%c0_18, %c0_19] : memref<128x128xf32, #tpu.memory_space<vmem>>, vector<128x128xf32>
    %cst_20 = arith.constant dense<0.000000e+00> : vector<16x128xf32>
    %23 = tpu.matmul %21, %22, %cst_20 {dimension_numbers = #tpu.dot_dimension_numbers<[1], [0], [0], [1], [0, 0, 1, 1], [], []>} : vector<16x128xf32>, vector<128x128xf32>, vector<16x128xf32> -> vector<16x128xf32>
    %c0_21 = arith.constant 0 : index
    %c0_22 = arith.constant 0 : index
    %24 = vector.load %arg9[%c0_21, %c0_22] : memref<1x128xf32, #tpu.memory_space<vmem>>, vector<1x128xf32>
    %25 = vector.broadcast %24 : vector<1x128xf32> to vector<16x128xf32>
    %26 = arith.addf %23, %25 : vector<16x128xf32>
    %c0_23 = arith.constant 0 : index
    %c0_24 = arith.constant 0 : index
    %27 = vector.load %arg10[%c0_23, %c0_24] : memref<16x128xf32, #tpu.memory_space<vmem>>, vector<16x128xf32>
    tpu.vector_store %arg10[%c0_23, %c0_24], %26 {strides = array<i32>} : memref<16x128xf32, #tpu.memory_space<vmem>>, vector<16x128xf32>,
    return
  }
  func.func @transform_0(%arg0: i32) -> (i32, i32) {
    %c0_i32 = arith.constant 0 : i32
    %c0_i32_0 = arith.constant 0 : i32
    return %arg0, %c0_i32 : i32, i32
  }
  func.func @transform_1(%arg0: i32) -> (i32, i32) {
    %c0_i32 = arith.constant 0 : i32
    %c0_i32_0 = arith.constant 0 : i32
    %c0_i32_1 = arith.constant 0 : i32
    return %c0_i32, %c0_i32_0 : i32, i32
  }
  func.func @transform_2(%arg0: i32) -> (i32, i32) {
    %c0_i32 = arith.constant 0 : i32
    %c0_i32_0 = arith.constant 0 : i32
    %c0_i32_1 = arith.constant 0 : i32
    return %c0_i32, %c0_i32_0 : i32, i32
  }
  func.func @transform_3(%arg0: i32) -> (i32, i32) {
    %c0_i32 = arith.constant 0 : i32
    %c0_i32_0 = arith.constant 0 : i32
    %c0_i32_1 = arith.constant 0 : i32
    return %c0_i32, %c0_i32_0 : i32, i32
  }
  func.func @transform_4(%arg0: i32) -> (i32, i32) {
    %c0_i32 = arith.constant 0 : i32
    %c0_i32_0 = arith.constant 0 : i32
    %c0_i32_1 = arith.constant 0 : i32
    return %c0_i32, %c0_i32_0 : i32, i32
  }
  func.func @transform_5(%arg0: i32) -> (i32, i32) {
    %c0_i32 = arith.constant 0 : i32
    %c0_i32_0 = arith.constant 0 : i32
    %c0_i32_1 = arith.constant 0 : i32
    return %c0_i32, %c0_i32_0 : i32, i32
  }
  func.func @transform_6(%arg0: i32) -> (i32, i32) {
    %c0_i32 = arith.constant 0 : i32
    %c0_i32_0 = arith.constant 0 : i32
    %c0_i32_1 = arith.constant 0 : i32
    return %c0_i32, %c0_i32_0 : i32, i32
  }
  func.func @transform_7(%arg0: i32) -> (i32, i32) {
    %c0_i32 = arith.constant 0 : i32
    %c0_i32_0 = arith.constant 0 : i32
    %c0_i32_1 = arith.constant 0 : i32
    return %c0_i32, %c0_i32_0 : i32, i32
  }
  func.func @transform_8(%arg0: i32) -> (i32, i32) {
    %c0_i32 = arith.constant 0 : i32
    %c0_i32_0 = arith.constant 0 : i32
    %c0_i32_1 = arith.constant 0 : i32
    return %c0_i32, %c0_i32_0 : i32, i32
  }
  func.func @transform_9(%arg0: i32) -> (i32, i32) {
    %c0_i32 = arith.constant 0 : i32
    %c0_i32_0 = arith.constant 0 : i32
    return %arg0, %c0_i32 : i32, i32
  }
}

</mosaic_0001>

<llo_original>
// kernel: tpu_custom_call.1
$region0: #{tpu_custom_call.1}
  #allocation0 [shape = 'u32[]', space=smem, size = 0x4, offset = 0x4, fixed_abs, tag = 'smem constant byte address 0x4 - core index']
  #allocation1 [shape = 'u32[144,128]{1,0:T(1,128)}', space=vmem, size = 0x12000, scoped, tag = 'internal scratch']
  %s0 = inlined_call_operand.vmem [shape: f32[16,8], index: 0, kind: input, shape index: {}]
  %s1 = inlined_call_operand.hbm [shape: f32[8,384], index: 1, kind: input, shape index: {}]
  %s2 = inlined_call_operand.hbm [shape: f32[1,384], index: 2, kind: input, shape index: {}]
  %s3 = inlined_call_operand.hbm [shape: f32[384,768], index: 3, kind: input, shape index: {}]
  %s4 = inlined_call_operand.hbm [shape: f32[1,768], index: 4, kind: input, shape index: {}]
  %s5 = inlined_call_operand.hbm [shape: f32[768,128], index: 5, kind: input, shape index: {}]
  %s6 = inlined_call_operand.hbm [shape: f32[1,128], index: 6, kind: input, shape index: {}]
  %s7 = inlined_call_operand.hbm [shape: f32[128,128], index: 7, kind: input, shape index: {}]
  %s8 = inlined_call_operand.hbm [shape: f32[1,128], index: 8, kind: input, shape index: {}]
  %s9 = inlined_call_operand.hbm [shape: f32[16,128], index: 9, kind: output, shape index: {}]
  %s10 = sld [smem:[#allocation0]]
  $region78: #{tpu_custom_call.1} parent=0
    _
  %s12 = ssub.s32 1, %s10
  %s13 = scalar_select 0, %s12, %s10
  $region1: #{tpu_custom_call.1} parent=0
    #allocation2 [shape = 'u8[12288]{0}', space=vmem, size = 0x3000, scoped, tag = 'input window, operand 1, single buffered']
    #allocation3 [shape = 's32[1]{0}', space=sflag, size = 0x4, scoped, tag = 'scoped memory for tpu_custom_call.1']
    #allocation4 [shape = 's32[1]{0}', space=sflag, size = 0x4, scoped, tag = 'scoped memory for tpu_custom_call.1']
    #allocation5 [shape = 'u8[1536]{0}', space=vmem, size = 0x800, scoped, tag = 'input window, operand 2, single buffered']
    #allocation6 [shape = 's32[1]{0}', space=sflag, size = 0x4, scoped, tag = 'scoped memory for tpu_custom_call.1']
    #allocation7 [shape = 'u8[1179648]{0}', space=vmem, size = 0x120000, scoped, tag = 'input window, operand 3, single buffered']
    #allocation8 [shape = 'u8[3072]{0}', space=vmem, size = 0xc00, scoped, tag = 'input window, operand 4, single buffered']
    #allocation9 [shape = 's32[1]{0}', space=sflag, size = 0x4, scoped, tag = 'scoped memory for tpu_custom_call.1']
    #allocation10 [shape = 'u8[393216]{0}', space=vmem, size = 0x60000, scoped, tag = 'input window, operand 5, single buffered']
    #allocation11 [shape = 'u8[512]{0}', space=vmem, size = 0x400, scoped, tag = 'input window, operand 6, single buffered']
    #allocation12 [shape = 's32[1]{0}', space=sflag, size = 0x4, scoped, tag = 'scoped memory for tpu_custom_call.1']
    #allocation13 [shape = 'u8[65536]{0}', space=vmem, size = 0x10000, scoped, tag = 'input window, operand 7, single buffered']
    #allocation14 [shape = 'u8[512]{0}', space=vmem, size = 0x400, scoped, tag = 'input window, operand 8, single buffered']
    #allocation15 [shape = 's32[1]{0}', space=sflag, size = 0x4, scoped, tag = 'scoped memory for tpu_custom_call.1']
    #allocation16 [shape = 'u8[8192]{0}', space=vmem, size = 0x2000, scoped, tag = 'output window, operand 0, single buffered']
    %14 = vsyncpa [#allocation3], 0
    %15 = vsyncpa [#allocation6], 0
    %16 = vsyncpa [#allocation9], 0
    %17 = vsyncpa [#allocation12], 0
    %18 = vsyncpa [#allocation15], 0
    %19 = vsyncpa [#allocation4], 0
    // Predicated region
    $region2: #{tpu_custom_call.1} parent=1 // pred_check
      _
    $region3: #{tpu_custom_call.1} parent=1 // pred_check_branch
      %21 = sbr.rel (0) target = $region5
    $region4: #{tpu_custom_call.1} parent=1 // pred_region
      _
    $region5: #{tpu_custom_call.1} parent=1 // pred_fallthru
      _
    // Predicated region
    $region6: #{tpu_custom_call.1} parent=1 // pred_check
      _
    $region7: #{tpu_custom_call.1} parent=1 // pred_check_branch
      %23 = sbr.rel (0) target = $region9
    $region8: #{tpu_custom_call.1} parent=1 // pred_region
      %s25 = ssub.s32 384, 384
      %26 = vsyncadd [#allocation3], %s25
      %s28 = sshll.u32 [#allocation2], 4
      %s29 = int_to_ptr.vmem [resolvable:$true] %s28
      %31 = dma.hbm_to_vmem [thread:$0]  %s1, 384, %s29, [#allocation3]
    $region9: #{tpu_custom_call.1} parent=1 // pred_fallthru
      _
    // Predicated region
    $region10: #{tpu_custom_call.1} parent=1 // pred_check
      _
    $region11: #{tpu_custom_call.1} parent=1 // pred_check_branch
      %33 = sbr.rel (0) target = $region13
    $region12: #{tpu_custom_call.1} parent=1 // pred_region
      %s35 = ssub.s32 48, 48
      %36 = vsyncadd [#allocation6], %s35
      %s38 = sshll.u32 [#allocation5], 4
      %s39 = int_to_ptr.vmem [resolvable:$true] %s38
      %41 = dma.hbm_to_vmem [thread:$0]  %s2, 48, %s39, [#allocation6]
    $region13: #{tpu_custom_call.1} parent=1 // pred_fallthru
      _
    // Predicated region
    $region14: #{tpu_custom_call.1} parent=1 // pred_check
      _
    $region15: #{tpu_custom_call.1} parent=1 // pred_check_branch
      %43 = sbr.rel (0) target = $region17
    $region16: #{tpu_custom_call.1} parent=1 // pred_region
      %s45 = ssub.s32 36864, 36864
      %46 = vsyncadd [#allocation6], %s45
      %s47 = sshll.u32 [#allocation7], 4
      %s48 = int_to_ptr.vmem [resolvable:$true] %s47
      %53 = dma.hbm_to_vmem [thread:$0]  %s3, 36864, %s48, [#allocation6], 768, 768, 48
    $region17: #{tpu_custom_call.1} parent=1 // pred_fallthru
      _
    // Predicated region
    $region18: #{tpu_custom_call.1} parent=1 // pred_check
      _
    $region19: #{tpu_custom_call.1} parent=1 // pred_check_branch
      %55 = sbr.rel (0) target = $region21
    $region20: #{tpu_custom_call.1} parent=1 // pred_region
      %s57 = ssub.s32 96, 96
      %58 = vsyncadd [#allocation9], %s57
      %s60 = sshll.u32 [#allocation8], 4
      %s61 = int_to_ptr.vmem [resolvable:$true] %s60
      %63 = dma.hbm_to_vmem [thread:$0]  %s4, 96, %s61, [#allocation9]
    $region21: #{tpu_custom_call.1} parent=1 // pred_fallthru
      _
    // Predicated region
    $region22: #{tpu_custom_call.1} parent=1 // pred_check
      _
    $region23: #{tpu_custom_call.1} parent=1 // pred_check_branch
      %65 = sbr.rel (0) target = $region25
    $region24: #{tpu_custom_call.1} parent=1 // pred_region
      %s67 = ssub.s32 12288, 12288
      %68 = vsyncadd [#allocation9], %s67
      %s69 = sshll.u32 [#allocation10], 4
      %s70 = int_to_ptr.vmem [resolvable:$true] %s69
      %75 = dma.hbm_to_vmem [thread:$0]  %s5, 12288, %s70, [#allocation9], 128, 128, 8
    $region25: #{tpu_custom_call.1} parent=1 // pred_fallthru
      _
    // Predicated region
    $region26: #{tpu_custom_call.1} parent=1 // pred_check
      _
    $region27: #{tpu_custom_call.1} parent=1 // pred_check_branch
      %77 = sbr.rel (0) target = $region29
    $region28: #{tpu_custom_call.1} parent=1 // pred_region
      %s79 = ssub.s32 16, 16
      %80 = vsyncadd [#allocation12], %s79
      %s82 = sshll.u32 [#allocation11], 4
      %s83 = int_to_ptr.vmem [resolvable:$true] %s82
      %85 = dma.hbm_to_vmem [thread:$0]  %s6, 16, %s83, [#allocation12]
    $region29: #{tpu_custom_call.1} parent=1 // pred_fallthru
      _
    // Predicated region
    $region30: #{tpu_custom_call.1} parent=1 // pred_check
      _
    $region31: #{tpu_custom_call.1} parent=1 // pred_check_branch
      %87 = sbr.rel (0) target = $region33
    $region32: #{tpu_custom_call.1} parent=1 // pred_region
      %s89 = ssub.s32 2048, 2048
      %90 = vsyncadd [#allocation12], %s89
      %s91 = sshll.u32 [#allocation13], 4
      %s92 = int_to_ptr.vmem [resolvable:$true] %s91
      %97 = dma.hbm_to_vmem [thread:$0]  %s7, 2048, %s92, [#allocation12], 128, 128, 8
    $region33: #{tpu_custom_call.1} parent=1 // pred_fallthru
      _
    // Predicated region
    $region34: #{tpu_custom_call.1} parent=1 // pred_check
      _
    $region35: #{tpu_custom_call.1} parent=1 // pred_check_branch
      %99 = sbr.rel (0) target = $region37
    $region36: #{tpu_custom_call.1} parent=1 // pred_region
      %s101 = ssub.s32 16, 16
      %102 = vsyncadd [#allocation15], %s101
      %s104 = sshll.u32 [#allocation14], 4
      %s105 = int_to_ptr.vmem [resolvable:$true] %s104
      %107 = dma.hbm_to_vmem [thread:$0]  %s8, 16, %s105, [#allocation15]
    $region37: #{tpu_custom_call.1} parent=1 // pred_fallthru
      _
    // Predicated region
    $region38: #{tpu_custom_call.1} parent=1 // pred_check
      _
    $region39: #{tpu_custom_call.1} parent=1 // pred_check_branch
      %109 = sbr.rel (0) target = $region41
    $region40: #{tpu_custom_call.1} parent=1 // pred_region
      %110 = dma.done [#allocation3], 384
    $region41: #{tpu_custom_call.1} parent=1 // pred_fallthru
      _
    // Predicated region
    $region42: #{tpu_custom_call.1} parent=1 // pred_check
      _
    $region43: #{tpu_custom_call.1} parent=1 // pred_check_branch
      %112 = sbr.rel (0) target = $region45
    $region44: #{tpu_custom_call.1} parent=1 // pred_region
      %113 = dma.done [#allocation6], 48
    $region45: #{tpu_custom_call.1} parent=1 // pred_fallthru
      _
    // Predicated region
    $region46: #{tpu_custom_call.1} parent=1 // pred_check
      _
    $region47: #{tpu_custom_call.1} parent=1 // pred_check_branch
      %115 = sbr.rel (0) target = $region49
    $region48: #{tpu_custom_call.1} parent=1 // pred_region
      %116 = dma.done [#allocation6], 36864
    $region49: #{tpu_custom_call.1} parent=1 // pred_fallthru
      _
    // Predicated region
    $region50: #{tpu_custom_call.1} parent=1 // pred_check
      _
    $region51: #{tpu_custom_call.1} parent=1 // pred_check_branch
      %118 = sbr.rel (0) target = $region53
    $region52: #{tpu_custom_call.1} parent=1 // pred_region
      %119 = dma.done [#allocation9], 96
    $region53: #{tpu_custom_call.1} parent=1 // pred_fallthru
      _
    // Predicated region
    $region54: #{tpu_custom_call.1} parent=1 // pred_check
      _
    $region55: #{tpu_custom_call.1} parent=1 // pred_check_branch
      %121 = sbr.rel (0) target = $region57
    $region56: #{tpu_custom_call.1} parent=1 // pred_region
      %122 = dma.done [#allocation9], 12288
    $region57: #{tpu_custom_call.1} parent=1 // pred_fallthru
      _
    // Predicated region
    $region58: #{tpu_custom_call.1} parent=1 // pred_check
      _
    $region59: #{tpu_custom_call.1} parent=1 // pred_check_branch
      %124 = sbr.rel (0) target = $region61
    $region60: #{tpu_custom_call.1} parent=1 // pred_region
      %125 = dma.done [#allocation12], 16
    $region61: #{tpu_custom_call.1} parent=1 // pred_fallthru
      _
    // Predicated region
    $region62: #{tpu_custom_call.1} parent=1 // pred_check
      _
    $region63: #{tpu_custom_call.1} parent=1 // pred_check_branch
      %127 = sbr.rel (0) target = $region65
    $region64: #{tpu_custom_call.1} parent=1 // pred_region
      %128 = dma.done [#allocation12], 2048
    $region65: #{tpu_custom_call.1} parent=1 // pred_fallthru
      _
    // Predicated region
    $region66: #{tpu_custom_call.1} parent=1 // pred_check
      _
    $region67: #{tpu_custom_call.1} parent=1 // pred_check_branch
      %130 = sbr.rel (0) target = $region69
    $region68: #{tpu_custom_call.1} parent=1 // pred_region
      %131 = dma.done [#allocation15], 16
    $region69: #{tpu_custom_call.1} parent=1 // pred_fallthru
      _
    %v132 = vld [vmem:[%s0] sm:$0xff]
    %v133 = vld [vmem:[%s0 + $0x8] sm:$0xff]
    %v134 = vld [vmem:[#allocation2] sm:$0xff]
    %v135 = vld [vmem:[#allocation2 + $0x8] sm:$0xff]
    %v136 = vld [vmem:[#allocation2 + $0x10] sm:$0xff]
    %v137 = vld [vmem:[#allocation5] sm:$0x7]
    %v139 = vlaneseq
    %v140 = vshrl.u32 %v139, 7
    %v141 = vsub.s32 0, %v140
    %v142 = vrot.slane %v137, %v141
    %v143 = vlaneseq
    %v144 = vshrl.u32 %v143, 7
    %v145 = vsub.s32 1, %v144
    %v146 = vrot.slane %v137, %v145
    %v147 = vlaneseq
    %v148 = vshrl.u32 %v147, 7
    %v149 = vsub.s32 2, %v148
    %v150 = vrot.slane %v137, %v149
    %vm154 = vcmask 64512
    %v156 = vsel %vm154, %v132, 0
    %v159 = vsel %vm154, %v133, 0
    %161 = vmatprep.subr.mxu0 0.0
    %162 = vmatpush1.msra.mxu0 0.0
    %163 = vmatprep.subr.mxu0 0.0
    %164 = vmatpush1.msra.mxu0 0.0
    %165 = vmatprep.subr.mxu0 0.0
    %166 = vmatpush1.msra.mxu0 0.0
    %167 = vmatprep.subr.mxu0 0.0
    %168 = vmatpush1.msra.mxu0 0.0
    %169 = vmatprep.subr.mxu0 0.0
    %170 = vmatpush1.msra.mxu0 0.0
    %171 = vmatprep.subr.mxu0 0.0
    %172 = vmatpush1.msra.mxu0 0.0
    %173 = vmatprep.subr.mxu0 0.0
    %174 = vmatpush1.msra.mxu0 0.0
    %175 = vmatprep.subr.mxu0 0.0
    %176 = vmatpush1.msra.mxu0 0.0
    %177 = vmatprep.subr.mxu0 0.0
    %178 = vmatpush1.msra.mxu0 0.0
    %179 = vmatprep.subr.mxu0 0.0
    %180 = vmatpush1.msra.mxu0 0.0
    %181 = vmatprep.subr.mxu0 0.0
    %182 = vmatpush1.msra.mxu0 0.0
    %183 = vmatprep.subr.mxu0 0.0
    %184 = vmatpush1.msra.mxu0 0.0
    %185 = vmatprep.subr.mxu0 0.0
    %186 = vmatpush1.msra.mxu0 0.0
    %187 = vmatprep.subr.mxu0 0.0
    %188 = vmatpush1.msra.mxu0 0.0
    %189 = vmatprep.subr.mxu0 0.0
    %190 = vmatpush1.msra.mxu0 0.0
    %191 = vmatprep.subr.mxu0 %v135
    %192 = vmatpush1.msra.mxu0 %v134
    %193 = vmatprep.subr.mxu0 0.0
    %194 = vmatpush2.msra.mxu0 0.0
    %195 = vmatprep.subr.mxu0 0.0
    %196 = vmatpush2.msra.mxu0 0.0
    %197 = vmatprep.subr.mxu0 0.0
    %198 = vmatpush2.msra.mxu0 0.0
    %199 = vmatprep.subr.mxu0 0.0
    %200 = vmatpush2.msra.mxu0 0.0
    %201 = vmatprep.subr.mxu0 0.0
    %202 = vmatpush2.msra.mxu0 0.0
    %203 = vmatprep.subr.mxu0 0.0
    %204 = vmatpush2.msra.mxu0 0.0
    %205 = vmatprep.subr.mxu0 0.0
    %206 = vmatpush2.msra.mxu0 0.0
    %207 = vmatprep.subr.mxu0 0.0
    %208 = vmatpush2.msra.mxu0 0.0
    %209 = vmatprep.subr.mxu0 0.0
    %210 = vmatpush2.msra.mxu0 0.0
    %211 = vmatprep.subr.mxu0 0.0
    %212 = vmatpush2.msra.mxu0 0.0
    %213 = vmatprep.subr.mxu0 0.0
    %214 = vmatpush2.msra.mxu0 0.0
    %215 = vmatprep.subr.mxu0 0.0
    %216 = vmatpush2.msra.mxu0 0.0
    %217 = vmatprep.subr.mxu0 0.0
    %218 = vmatpush2.msra.mxu0 0.0
    %219 = vmatprep.subr.mxu0 0.0
    %220 = vmatpush2.msra.mxu0 0.0
    %221 = vmatprep.subr.mxu0 0.0
    %222 = vmatpush2.msra.mxu0 0.0
    %223 = vmatprep.subr.mxu0 0.0
    %224 = vmatpush2.msra.mxu0 0.0
    %225 = vmatprep.mubr.f32.mxu0 0.0
    %226 = vmatmul.mubr.f32.gmra.mxu0 %v156
    %v227 = vpop.f32.mrf.mxu0
    %v228 = vadd.f32 %v142, %v227
    %v229 = vpop.f32.mrf.mxu0
    %v230 = vadd.f32 %v146, %v229
    %231 = vmatprep.mubr.f32.mxu0 0.0
    %232 = vmatmul.mubr.f32.gmra.mxu0 %v159
    %v233 = vpop.f32.mrf.mxu0
    %v234 = vadd.f32 %v142, %v233
    %v235 = vpop.f32.mrf.mxu0
    %v236 = vadd.f32 %v146, %v235
    %237 = vdwg.mxu0
    %238 = vmatprep.subr.mxu0 0.0
    %239 = vmatpush1.msra.mxu0 0.0
    %240 = vmatprep.subr.mxu0 0.0
    %241 = vmatpush1.msra.mxu0 0.0
    %242 = vmatprep.subr.mxu0 0.0
    %243 = vmatpush1.msra.mxu0 0.0
    %244 = vmatprep.subr.mxu0 0.0
    %245 = vmatpush1.msra.mxu0 0.0
    %246 = vmatprep.subr.mxu0 0.0
    %247 = vmatpush1.msra.mxu0 0.0
    %248 = vmatprep.subr.mxu0 0.0
    %249 = vmatpush1.msra.mxu0 0.0
    %250 = vmatprep.subr.mxu0 0.0
    %251 = vmatpush1.msra.mxu0 0.0
    %252 = vmatprep.subr.mxu0 0.0
    %253 = vmatpush1.msra.mxu0 0.0
    %254 = vmatprep.subr.mxu0 0.0
    %255 = vmatpush1.msra.mxu0 0.0
    %256 = vmatprep.subr.mxu0 0.0
    %257 = vmatpush1.msra.mxu0 0.0
    %258 = vmatprep.subr.mxu0 0.0
    %259 = vmatpush1.msra.mxu0 0.0
    %260 = vmatprep.subr.mxu0 0.0
    %261 = vmatpush1.msra.mxu0 0.0
    %262 = vmatprep.subr.mxu0 0.0
    %263 = vmatpush1.msra.mxu0 0.0
    %264 = vmatprep.subr.mxu0 0.0
    %265 = vmatpush1.msra.mxu0 0.0
    %266 = vmatprep.subr.mxu0 0.0
    %267 = vmatpush1.msra.mxu0 0.0
    %268 = vmatprep.subr.mxu0 0.0
    %269 = vmatpush1.msra.mxu0 %v136
    %270 = vmatprep.subr.mxu0 0.0
    %271 = vmatpush2.msra.mxu0 0.0
    %272 = vmatprep.subr.mxu0 0.0
    %273 = vmatpush2.msra.mxu0 0.0
    %274 = vmatprep.subr.mxu0 0.0
    %275 = vmatpush2.msra.mxu0 0.0
    %276 = vmatprep.subr.mxu0 0.0
    %277 = vmatpush2.msra.mxu0 0.0
    %278 = vmatprep.subr.mxu0 0.0
    %279 = vmatpush2.msra.mxu0 0.0
    %280 = vmatprep.subr.mxu0 0.0
    %281 = vmatpush2.msra.mxu0 0.0
    %282 = vmatprep.subr.mxu0 0.0
    %283 = vmatpush2.msra.mxu0 0.0
    %284 = vmatprep.subr.mxu0 0.0
    %285 = vmatpush2.msra.mxu0 0.0
    %286 = vmatprep.subr.mxu0 0.0
    %287 = vmatpush2.msra.mxu0 0.0
    %288 = vmatprep.subr.mxu0 0.0
    %289 = vmatpush2.msra.mxu0 0.0
    %290 = vmatprep.subr.mxu0 0.0
    %291 = vmatpush2.msra.mxu0 0.0
    %292 = vmatprep.subr.mxu0 0.0
    %293 = vmatpush2.msra.mxu0 0.0
    %294 = vmatprep.subr.mxu0 0.0
    %295 = vmatpush2.msra.mxu0 0.0
    %296 = vmatprep.subr.mxu0 0.0
    %297 = vmatpush2.msra.mxu0 0.0
    %298 = vmatprep.subr.mxu0 0.0
    %299 = vmatpush2.msra.mxu0 0.0
    %300 = vmatprep.subr.mxu0 0.0
    %301 = vmatpush2.msra.mxu0 0.0
    %302 = vmatprep.mubr.f32.mxu0 0.0
    %303 = vmatmul.mubr.f32.gmra.mxu0 %v156
    %v304 = vpop.f32.mrf.mxu0
    %v305 = vadd.f32 %v150, %v304
    %v306 = vpop.f32.mrf.mxu0
    %307 = vmatprep.mubr.f32.mxu0 0.0
    %308 = vmatmul.mubr.f32.gmra.mxu0 %v159
    %v309 = vpop.f32.mrf.mxu0
    %v310 = vadd.f32 %v150, %v309
    %v311 = vpop.f32.mrf.mxu0
    %312 = vdwg.mxu0
    %v313 = vmax.f32 %v228, 0.0
    %v314 = vmax.f32 %v230, 0.0
    %v315 = vmax.f32 %v305, 0.0
    %v316 = vmax.f32 %v234, 0.0
    %v317 = vmax.f32 %v236, 0.0
    %v318 = vmax.f32 %v310, 0.0
    %v319 = vld [vmem:[#allocation7] sm:$0xff]
    %v320 = vld [vmem:[#allocation7 + $0x8] sm:$0xff]
    %v321 = vld [vmem:[#allocation7 + $0x10] sm:$0xff]
    %v322 = vld [vmem:[#allocation7 + $0x18] sm:$0xff]
    %v323 = vld [vmem:[#allocation7 + $0x20] sm:$0xff]
    %v324 = vld [vmem:[#allocation7 + $0x28] sm:$0xff]
    %v325 = vld [vmem:[#allocation7 + $0x30] sm:$0xff]
    %v326 = vld [vmem:[#allocation7 + $0x38] sm:$0xff]
    %v327 = vld [vmem:[#allocation7 + $0x40] sm:$0xff]
    %v328 = vld [vmem:[#allocation7 + $0x48] sm:$0xff]
    %v329 = vld [vmem:[#allocation7 + $0x50] sm:$0xff]
    %v330 = vld [vmem:[#allocation7 + $0x58] sm:$0xff]
    %v331 = vld [vmem:[#allocation7 + $0x60] sm:$0xff]
    %v332 = vld [vmem:[#allocation7 + $0x68] sm:$0xff]
    %v333 = vld [vmem:[#allocation7 + $0x70] sm:$0xff]
    %v334 = vld [vmem:[#allocation7 + $0x78] sm:$0xff]
    %v335 = vld [vmem:[#allocation7 + $0x80] sm:$0xff]
    %v336 = vld [vmem:[#allocation7 + $0x88] sm:$0xff]
    %v337 = vld [vmem:[#allocation7 + $0x90] sm:$0xff]
    %v338 = vld [vmem:[#allocation7 + $0x98] sm:$0xff]
    %v339 = vld [vmem:[#allocation7 + $0xa0] sm:$0xff]
    %v340 = vld [vmem:[#allocation7 + $0xa8] sm:$0xff]
    %v341 = vld [vmem:[#allocation7 + $0xb0] sm:$0xff]
    %v342 = vld [vmem:[#allocation7 + $0xb8] sm:$0xff]
    %v343 = vld [vmem:[#allocation7 + $0xc0] sm:$0xff]
    %v344 = vld [vmem:[#allocation7 + $0xc8] sm:$0xff]
    %v345 = vld [vmem:[#allocation7 + $0xd0] sm:$0xff]
    %v346 = vld [vmem:[#allocation7 + $0xd8] sm:$0xff]
    %v347 = vld [vmem:[#allocation7 + $0xe0] sm:$0xff]
    %v348 = vld [vmem:[#allocation7 + $0xe8] sm:$0xff]
    %v349 = vld [vmem:[#allocation7 + $0xf0] sm:$0xff]
    %v350 = vld [vmem:[#allocation7 + $0xf8] sm:$0xff]
    %v351 = vld [vmem:[#allocation7 + $0x100] sm:$0xff]
    %v352 = vld [vmem:[#allocation7 + $0x108] sm:$0xff]
    %v353 = vld [vmem:[#allocation7 + $0x110] sm:$0xff]
    %v354 = vld [vmem:[#allocation7 + $0x118] sm:$0xff]
    %v355 = vld [vmem:[#allocation7 + $0x120] sm:$0xff]
    %v356 = vld [vmem:[#allocation7 + $0x128] sm:$0xff]
    %v357 = vld [vmem:[#allocation7 + $0x130] sm:$0xff]
    %v358 = vld [vmem:[#allocation7 + $0x138] sm:$0xff]
    %v359 = vld [vmem:[#allocation7 + $0x140] sm:$0xff]
    %v360 = vld [vmem:[#allocation7 + $0x148] sm:$0xff]
    %v361 = vld [vmem:[#allocation7 + $0x150] sm:$0xff]
    %v362 = vld [vmem:[#allocation7 + $0x158] sm:$0xff]
    %v363 = vld [vmem:[#allocation7 + $0x160] sm:$0xff]
    %v364 = vld [vmem:[#allocation7 + $0x168] sm:$0xff]
    %v365 = vld [vmem:[#allocation7 + $0x170] sm:$0xff]
    %v366 = vld [vmem:[#allocation7 + $0x178] sm:$0xff]
    %v367 = vld [vmem:[#allocation7 + $0x180] sm:$0xff]
    %v368 = vld [vmem:[#allocation7 + $0x188] sm:$0xff]
    %v369 = vld [vmem:[#allocation7 + $0x190] sm:$0xff]
    %v370 = vld [vmem:[#allocation7 + $0x198] sm:$0xff]
    %v371 = vld [vmem:[#allocation7 + $0x1a0] sm:$0xff]
    %v372 = vld [vmem:[#allocation7 + $0x1a8] sm:$0xff]
    %v373 = vld [vmem:[#allocation7 + $0x1b0] sm:$0xff]
    %v374 = vld [vmem:[#allocation7 + $0x1b8] sm:$0xff]
    %v375 = vld [vmem:[#allocation7 + $0x1c0] sm:$0xff]
    %v376 = vld [vmem:[#allocation7 + $0x1c8] sm:$0xff]
    %v377 = vld [vmem:[#allocation7 + $0x1d0] sm:$0xff]
    %v378 = vld [vmem:[#allocation7 + $0x1d8] sm:$0xff]
    %v379 = vld [vmem:[#allocation7 + $0x1e0] sm:$0xff]
    %v380 = vld [vmem:[#allocation7 + $0x1e8] sm:$0xff]
    %v381 = vld [vmem:[#allocation7 + $0x1f0] sm:$0xff]
    %v382 = vld [vmem:[#allocation7 + $0x1f8] sm:$0xff]
    %v383 = vld [vmem:[#allocation7 + $0x200] sm:$0xff]
    %v384 = vld [vmem:[#allocation7 + $0x208] sm:$0xff]
    %v385 = vld [vmem:[#allocation7 + $0x210] sm:$0xff]
    %v386 = vld [vmem:[#allocation7 + $0x218] sm:$0xff]
    %v387 = vld [vmem:[#allocation7 + $0x220] sm:$0xff]
    %v388 = vld [vmem:[#allocation7 + $0x228] sm:$0xff]
    %v389 = vld [vmem:[#allocation7 + $0x230] sm:$0xff]
    %v390 = vld [vmem:[#allocation7 + $0x238] sm:$0xff]
    %v391 = vld [vmem:[#allocation7 + $0x240] sm:$0xff]
    %v392 = vld [vmem:[#allocation7 + $0x248] sm:$0xff]
    %v393 = vld [vmem:[#allocation7 + $0x250] sm:$0xff]
    %v394 = vld [vmem:[#allocation7 + $0x258] sm:$0xff]
    %v395 = vld [vmem:[#allocation7 + $0x260] sm:$0xff]
    %v396 = vld [vmem:[#allocation7 + $0x268] sm:$0xff]
    %v397 = vld [vmem:[#allocation7 + $0x270] sm:$0xff]
    %v398 = vld [vmem:[#allocation7 + $0x278] sm:$0xff]
    %v399 = vld [vmem:[#allocation7 + $0x280] sm:$0xff]
    %v400 = vld [vmem:[#allocation7 + $0x288] sm:$0xff]
    %v401 = vld [vmem:[#allocation7 + $0x290] sm:$0xff]
    %v402 = vld [vmem:[#allocation7 + $0x298] sm:$0xff]
    %v403 = vld [vmem:[#allocation7 + $0x2a0] sm:$0xff]
    %v404 = vld [vmem:[#allocation7 + $0x2a8] sm:$0xff]
    %v405 = vld [vmem:[#allocation7 + $0x2b0] sm:$0xff]
    %v406 = vld [vmem:[#allocation7 + $0x2b8] sm:$0xff]
    %v407 = vld [vmem:[#allocation7 + $0x2c0] sm:$0xff]
    %v408 = vld [vmem:[#allocation7 + $0x2c8] sm:$0xff]
    %v409 = vld [vmem:[#allocation7 + $0x2d0] sm:$0xff]
    %v410 = vld [vmem:[#allocation7 + $0x2d8] sm:$0xff]
    %v411 = vld [vmem:[#allocation7 + $0x2e0] sm:$0xff]
    %v412 = vld [vmem:[#allocation7 + $0x2e8] sm:$0xff]
    %v413 = vld [vmem:[#allocation7 + $0x2f0] sm:$0xff]
    %v414 = vld [vmem:[#allocation7 + $0x2f8] sm:$0xff]
    %v415 = vld [vmem:[#allocation7 + $0x300] sm:$0xff]
    %v416 = vld [vmem:[#allocation7 + $0x308] sm:$0xff]
    %v417 = vld [vmem:[#allocation7 + $0x310] sm:$0xff]
    %v418 = vld [vmem:[#allocation7 + $0x318] sm:$0xff]
    %v419 = vld [vmem:[#allocation7 + $0x320] sm:$0xff]
    %v420 = vld [vmem:[#allocation7 + $0x328] sm:$0xff]
    %v421 = vld [vmem:[#allocation7 + $0x330] sm:$0xff]
    %v422 = vld [vmem:[#allocation7 + $0x338] sm:$0xff]
    %v423 = vld [vmem:[#allocation7 + $0x340] sm:$0xff]
    %v424 = vld [vmem:[#allocation7 + $0x348] sm:$0xff]
    %v425 = vld [vmem:[#allocation7 + $0x350] sm:$0xff]
    %v426 = vld [vmem:[#allocation7 + $0x358] sm:$0xff]
    %v427 = vld [vmem:[#allocation7 + $0x360] sm:$0xff]
    %v428 = vld [vmem:[#allocation7 + $0x368] sm:$0xff]
    %v429 = vld [vmem:[#allocation7 + $0x370] sm:$0xff]
    %v430 = vld [vmem:[#allocation7 + $0x378] sm:$0xff]
    %v431 = vld [vmem:[#allocation7 + $0x380] sm:$0xff]
    %v432 = vld [vmem:[#allocation7 + $0x388] sm:$0xff]
    %v433 = vld [vmem:[#allocation7 + $0x390] sm:$0xff]
    %v434 = vld [vmem:[#allocation7 + $0x398] sm:$0xff]
    %v435 = vld [vmem:[#allocation7 + $0x3a0] sm:$0xff]
    %v436 = vld [vmem:[#allocation7 + $0x3a8] sm:$0xff]
    %v437 = vld [vmem:[#allocation7 + $0x3b0] sm:$0xff]
    %v438 = vld [vmem:[#allocation7 + $0x3b8] sm:$0xff]
    %v439 = vld [vmem:[#allocation7 + $0x3c0] sm:$0xff]
    %v440 = vld [vmem:[#allocation7 + $0x3c8] sm:$0xff]
    %v441 = vld [vmem:[#allocation7 + $0x3d0] sm:$0xff]
    %v442 = vld [vmem:[#allocation7 + $0x3d8] sm:$0xff]
    %v443 = vld [vmem:[#allocation7 + $0x3e0] sm:$0xff]
    %v444 = vld [vmem:[#allocation7 + $0x3e8] sm:$0xff]
    %v445 = vld [vmem:[#allocation7 + $0x3f0] sm:$0xff]
    %v446 = vld [vmem:[#allocation7 + $0x3f8] sm:$0xff]
    %v447 = vld [vmem:[#allocation7 + $0x400] sm:$0xff]
    %v448 = vld [vmem:[#allocation7 + $0x408] sm:$0xff]
    %v449 = vld [vmem:[#allocation7 + $0x410] sm:$0xff]
    %v450 = vld [vmem:[#allocation7 + $0x418] sm:$0xff]
    %v451 = vld [vmem:[#allocation7 + $0x420] sm:$0xff]
    %v452 = vld [vmem:[#allocation7 + $0x428] sm:$0xff]
    %v453 = vld [vmem:[#allocation7 + $0x430] sm:$0xff]
    %v454 = vld [vmem:[#allocation7 + $0x438] sm:$0xff]
    %v455 = vld [vmem:[#allocation7 + $0x440] sm:$0xff]
    %v456 = vld [vmem:[#allocation7 + $0x448] sm:$0xff]
    %v457 = vld [vmem:[#allocation7 + $0x450] sm:$0xff]
    %v458 = vld [vmem:[#allocation7 + $0x458] sm:$0xff]
    %v459 = vld [vmem:[#allocation7 + $0x460] sm:$0xff]
    %v460 = vld [vmem:[#allocation7 + $0x468] sm:$0xff]
    %v461 = vld [vmem:[#allocation7 + $0x470] sm:$0xff]
    %v462 = vld [vmem:[#allocation7 + $0x478] sm:$0xff]
    %v463 = vld [vmem:[#allocation7 + $0x480] sm:$0xff]
    %v464 = vld [vmem:[#allocation7 + $0x488] sm:$0xff]
    %v465 = vld [vmem:[#allocation7 + $0x490] sm:$0xff]
    %v466 = vld [vmem:[#allocation7 + $0x498] sm:$0xff]
    %v467 = vld [vmem:[#allocation7 + $0x4a0] sm:$0xff]
    %v468 = vld [vmem:[#allocation7 + $0x4a8] sm:$0xff]
    %v469 = vld [vmem:[#allocation7 + $0x4b0] sm:$0xff]
    %v470 = vld [vmem:[#allocation7 + $0x4b8] sm:$0xff]
    %v471 = vld [vmem:[#allocation7 + $0x4c0] sm:$0xff]
    %v472 = vld [vmem:[#allocation7 + $0x4c8] sm:$0xff]
    %v473 = vld [vmem:[#allocation7 + $0x4d0] sm:$0xff]
    %v474 = vld [vmem:[#allocation7 + $0x4d8] sm:$0xff]
    %v475 = vld [vmem:[#allocation7 + $0x4e0] sm:$0xff]
    %v476 = vld [vmem:[#allocation7 + $0x4e8] sm:$0xff]
    %v477 = vld [vmem:[#allocation7 + $0x4f0] sm:$0xff]
    %v478 = vld [vmem:[#allocation7 + $0x4f8] sm:$0xff]
    %v479 = vld [vmem:[#allocation7 + $0x500] sm:$0xff]
    %v480 = vld [vmem:[#allocation7 + $0x508] sm:$0xff]
    %v481 = vld [vmem:[#allocation7 + $0x510] sm:$0xff]
    %v482 = vld [vmem:[#allocation7 + $0x518] sm:$0xff]
    %v483 = vld [vmem:[#allocation7 + $0x520] sm:$0xff]
    %v484 = vld [vmem:[#allocation7 + $0x528] sm:$0xff]
    %v485 = vld [vmem:[#allocation7 + $0x530] sm:$0xff]
    %v486 = vld [vmem:[#allocation7 + $0x538] sm:$0xff]
    %v487 = vld [vmem:[#allocation7 + $0x540] sm:$0xff]
    %v488 = vld [vmem:[#allocation7 + $0x548] sm:$0xff]
    %v489 = vld [vmem:[#allocation7 + $0x550] sm:$0xff]
    %v490 = vld [vmem:[#allocation7 + $0x558] sm:$0xff]
    %v491 = vld [vmem:[#allocation7 + $0x560] sm:$0xff]
    %v492 = vld [vmem:[#allocation7 + $0x568] sm:$0xff]
    %v493 = vld [vmem:[#allocation7 + $0x570] sm:$0xff]
    %v494 = vld [vmem:[#allocation7 + $0x578] sm:$0xff]
    %v495 = vld [vmem:[#allocation7 + $0x580] sm:$0xff]
    %v496 = vld [vmem:[#allocation7 + $0x588] sm:$0xff]
    %v497 = vld [vmem:[#allocation7 + $0x590] sm:$0xff]
    %v498 = vld [vmem:[#allocation7 + $0x598] sm:$0xff]
    %v499 = vld [vmem:[#allocation7 + $0x5a0] sm:$0xff]
    %v500 = vld [vmem:[#allocation7 + $0x5a8] sm:$0xff]
    %v501 = vld [vmem:[#allocation7 + $0x5b0] sm:$0xff]
    %v502 = vld [vmem:[#allocation7 + $0x5b8] sm:$0xff]
    %v503 = vld [vmem:[#allocation7 + $0x5c0] sm:$0xff]
    %v504 = vld [vmem:[#allocation7 + $0x5c8] sm:$0xff]
    %v505 = vld [vmem:[#allocation7 + $0x5d0] sm:$0xff]
    %v506 = vld [vmem:[#allocation7 + $0x5d8] sm:$0xff]
    %v507 = vld [vmem:[#allocation7 + $0x5e0] sm:$0xff]
    %v508 = vld [vmem:[#allocation7 + $0x5e8] sm:$0xff]
    %v509 = vld [vmem:[#allocation7 + $0x5f0] sm:$0xff]
    %v510 = vld [vmem:[#allocation7 + $0x5f8] sm:$0xff]
    %v511 = vld [vmem:[#allocation7 + $0x600] sm:$0xff]
    %v512 = vld [vmem:[#allocation7 + $0x608] sm:$0xff]
    %v513 = vld [vmem:[#allocation7 + $0x610] sm:$0xff]
    %v514 = vld [vmem:[#allocation7 + $0x618] sm:$0xff]
    %v515 = vld [vmem:[#allocation7 + $0x620] sm:$0xff]
    %v516 = vld [vmem:[#allocation7 + $0x628] sm:$0xff]
    %v517 = vld [vmem:[#allocation7 + $0x630] sm:$0xff]
    %v518 = vld [vmem:[#allocation7 + $0x638] sm:$0xff]
    %v519 = vld [vmem:[#allocation7 + $0x640] sm:$0xff]
    %v520 = vld [vmem:[#allocation7 + $0x648] sm:$0xff]
    %v521 = vld [vmem:[#allocation7 + $0x650] sm:$0xff]
    %v522 = vld [vmem:[#allocation7 + $0x658] sm:$0xff]
    %v523 = vld [vmem:[#allocation7 + $0x660] sm:$0xff]
    %v524 = vld [vmem:[#allocation7 + $0x668] sm:$0xff]
    %v525 = vld [vmem:[#allocation7 + $0x670] sm:$0xff]
    %v526 = vld [vmem:[#allocation7 + $0x678] sm:$0xff]
    %v527 = vld [vmem:[#allocation7 + $0x680] sm:$0xff]
    %v528 = vld [vmem:[#allocation7 + $0x688] sm:$0xff]
    %v529 = vld [vmem:[#allocation7 + $0x690] sm:$0xff]
    %v530 = vld [vmem:[#allocation7 + $0x698] sm:$0xff]
    %v531 = vld [vmem:[#allocation7 + $0x6a0] sm:$0xff]
    %v532 = vld [vmem:[#allocation7 + $0x6a8] sm:$0xff]
    %v533 = vld [vmem:[#allocation7 + $0x6b0] sm:$0xff]
    %v534 = vld [vmem:[#allocation7 + $0x6b8] sm:$0xff]
    %v535 = vld [vmem:[#allocation7 + $0x6c0] sm:$0xff]
    %v536 = vld [vmem:[#allocation7 + $0x6c8] sm:$0xff]
    %v537 = vld [vmem:[#allocation7 + $0x6d0] sm:$0xff]
    %v538 = vld [vmem:[#allocation7 + $0x6d8] sm:$0xff]
    %v539 = vld [vmem:[#allocation7 + $0x6e0] sm:$0xff]
    %v540 = vld [vmem:[#allocation7 + $0x6e8] sm:$0xff]
    %v541 = vld [vmem:[#allocation7 + $0x6f0] sm:$0xff]
    %v542 = vld [vmem:[#allocation7 + $0x6f8] sm:$0xff]
    %v543 = vld [vmem:[#allocation7 + $0x700] sm:$0xff]
    %v544 = vld [vmem:[#allocation7 + $0x708] sm:$0xff]
    %v545 = vld [vmem:[#allocation7 + $0x710] sm:$0xff]
    %v546 = vld [vmem:[#allocation7 + $0x718] sm:$0xff]
    %v547 = vld [vmem:[#allocation7 + $0x720] sm:$0xff]
    %v548 = vld [vmem:[#allocation7 + $0x728] sm:$0xff]
    %v549 = vld [vmem:[#allocation7 + $0x730] sm:$0xff]
    %v550 = vld [vmem:[#allocation7 + $0x738] sm:$0xff]
    %v551 = vld [vmem:[#allocation7 + $0x740] sm:$0xff]
    %v552 = vld [vmem:[#allocation7 + $0x748] sm:$0xff]
    %v553 = vld [vmem:[#allocation7 + $0x750] sm:$0xff]
    %v554 = vld [vmem:[#allocation7 + $0x758] sm:$0xff]
    %v555 = vld [vmem:[#allocation7 + $0x760] sm:$0xff]
    %v556 = vld [vmem:[#allocation7 + $0x768] sm:$0xff]
    %v557 = vld [vmem:[#allocation7 + $0x770] sm:$0xff]
    %v558 = vld [vmem:[#allocation7 + $0x778] sm:$0xff]
    %v559 = vld [vmem:[#allocation7 + $0x780] sm:$0xff]
    %v560 = vld [vmem:[#allocation7 + $0x788] sm:$0xff]
    %v561 = vld [vmem:[#allocation7 + $0x790] sm:$0xff]
    %v562 = vld [vmem:[#allocation7 + $0x798] sm:$0xff]
    %v563 = vld [vmem:[#allocation7 + $0x7a0] sm:$0xff]
    %v564 = vld [vmem:[#allocation7 + $0x7a8] sm:$0xff]
    %v565 = vld [vmem:[#allocation7 + $0x7b0] sm:$0xff]
    %v566 = vld [vmem:[#allocation7 + $0x7b8] sm:$0xff]
    %v567 = vld [vmem:[#allocation7 + $0x7c0] sm:$0xff]
    %v568 = vld [vmem:[#allocation7 + $0x7c8] sm:$0xff]
    %v569 = vld [vmem:[#allocation7 + $0x7d0] sm:$0xff]
    %v570 = vld [vmem:[#allocation7 + $0x7d8] sm:$0xff]
    %v571 = vld [vmem:[#allocation7 + $0x7e0] sm:$0xff]
    %v572 = vld [vmem:[#allocation7 + $0x7e8] sm:$0xff]
    %v573 = vld [vmem:[#allocation7 + $0x7f0] sm:$0xff]
    %v574 = vld [vmem:[#allocation7 + $0x7f8] sm:$0xff]
    %v575 = vld [vmem:[#allocation7 + $0x800] sm:$0xff]
    %v576 = vld [vmem:[#allocation7 + $0x808] sm:$0xff]
    %v577 = vld [vmem:[#allocation7 + $0x810] sm:$0xff]
    %v578 = vld [vmem:[#allocation7 + $0x818] sm:$0xff]
    %v579 = vld [vmem:[#allocation7 + $0x820] sm:$0xff]
    %v580 = vld [vmem:[#allocation7 + $0x828] sm:$0xff]
    %v581 = vld [vmem:[#allocation7 + $0x830] sm:$0xff]
    %v582 = vld [vmem:[#allocation7 + $0x838] sm:$0xff]
    %v583 = vld [vmem:[#allocation7 + $0x840] sm:$0xff]
    %v584 = vld [vmem:[#allocation7 + $0x848] sm:$0xff]
    %v585 = vld [vmem:[#allocation7 + $0x850] sm:$0xff]
    %v586 = vld [vmem:[#allocation7 + $0x858] sm:$0xff]
    %v587 = vld [vmem:[#allocation7 + $0x860] sm:$0xff]
    %v588 = vld [vmem:[#allocation7 + $0x868] sm:$0xff]
    %v589 = vld [vmem:[#allocation7 + $0x870] sm:$0xff]
    %v590 = vld [vmem:[#allocation7 + $0x878] sm:$0xff]
    %v591 = vld [vmem:[#allocation7 + $0x880] sm:$0xff]
    %v592 = vld [vmem:[#allocation7 + $0x888] sm:$0xff]
    %v593 = vld [vmem:[#allocation7 + $0x890] sm:$0xff]
    %v594 = vld [vmem:[#allocation7 + $0x898] sm:$0xff]
    %v595 = vld [vmem:[#allocation7 + $0x8a0] sm:$0xff]
    %v596 = vld [vmem:[#allocation7 + $0x8a8] sm:$0xff]
    %v597 = vld [vmem:[#allocation7 + $0x8b0] sm:$0xff]
    %v598 = vld [vmem:[#allocation7 + $0x8b8] sm:$0xff]
    %v599 = vld [vmem:[#allocation7 + $0x8c0] sm:$0xff]
    %v600 = vld [vmem:[#allocation7 + $0x8c8] sm:$0xff]
    %v601 = vld [vmem:[#allocation7 + $0x8d0] sm:$0xff]
    %v602 = vld [vmem:[#allocation7 + $0x8d8] sm:$0xff]
    %v603 = vld [vmem:[#allocation7 + $0x8e0] sm:$0xff]
    %v604 = vld [vmem:[#allocation7 + $0x8e8] sm:$0xff]
    %v605 = vld [vmem:[#allocation7 + $0x8f0] sm:$0xff]
    %v606 = vld [vmem:[#allocation7 + $0x8f8] sm:$0xff]
    %v607 = vld [vmem:[#allocation8] sm:$0x3f]
    %v609 = vlaneseq
    %v610 = vshrl.u32 %v609, 7
    %v611 = vsub.s32 0, %v610
    %v612 = vrot.slane %v607, %v611
    %v613 = vlaneseq
    %v614 = vshrl.u32 %v613, 7
    %v615 = vsub.s32 1, %v614
    %v616 = vrot.slane %v607, %v615
    %v617 = vlaneseq
    %v618 = vshrl.u32 %v617, 7
    %v619 = vsub.s32 2, %v618
    %v620 = vrot.slane %v607, %v619
    %v621 = vlaneseq
    %v622 = vshrl.u32 %v621, 7
    %v623 = vsub.s32 3, %v622
    %v624 = vrot.slane %v607, %v623
    %v625 = vlaneseq
    %v626 = vshrl.u32 %v625, 7
    %v627 = vsub.s32 4, %v626
    %v628 = vrot.slane %v607, %v627
    %v629 = vlaneseq
    %v630 = vshrl.u32 %v629, 7
    %v631 = vsub.s32 5, %v630
    %v632 = vrot.slane %v607, %v631
    %639 = vmatprep.subr.mxu0 %v410
    %640 = vmatpush1.msra.mxu0 %v409
    %641 = vmatprep.subr.mxu0 %v404
    %642 = vmatpush1.msra.mxu0 %v403
    %643 = vmatprep.subr.mxu0 %v398
    %644 = vmatpush1.msra.mxu0 %v397
    %645 = vmatprep.subr.mxu0 %v392
    %646 = vmatpush1.msra.mxu0 %v391
    %647 = vmatprep.subr.mxu0 %v386
    %648 = vmatpush1.msra.mxu0 %v385
    %649 = vmatprep.subr.mxu0 %v380
    %650 = vmatpush1.msra.mxu0 %v379
    %651 = vmatprep.subr.mxu0 %v374
    %652 = vmatpush1.msra.mxu0 %v373
    %653 = vmatprep.subr.mxu0 %v368
    %654 = vmatpush1.msra.mxu0 %v367
    %655 = vmatprep.subr.mxu0 %v362
    %656 = vmatpush1.msra.mxu0 %v361
    %657 = vmatprep.subr.mxu0 %v356
    %658 = vmatpush1.msra.mxu0 %v355
    %659 = vmatprep.subr.mxu0 %v350
    %660 = vmatpush1.msra.mxu0 %v349
    %661 = vmatprep.subr.mxu0 %v344
    %662 = vmatpush1.msra.mxu0 %v343
    %663 = vmatprep.subr.mxu0 %v338
    %664 = vmatpush1.msra.mxu0 %v337
    %665 = vmatprep.subr.mxu0 %v332
    %666 = vmatpush1.msra.mxu0 %v331
    %667 = vmatprep.subr.mxu0 %v326
    %668 = vmatpush1.msra.mxu0 %v325
    %669 = vmatprep.subr.mxu0 %v320
    %670 = vmatpush1.msra.mxu0 %v319
    %671 = vmatprep.subr.mxu0 %v506
    %672 = vmatpush2.msra.mxu0 %v505
    %673 = vmatprep.subr.mxu0 %v500
    %674 = vmatpush2.msra.mxu0 %v499
    %675 = vmatprep.subr.mxu0 %v494
    %676 = vmatpush2.msra.mxu0 %v493
    %677 = vmatprep.subr.mxu0 %v488
    %678 = vmatpush2.msra.mxu0 %v487
    %679 = vmatprep.subr.mxu0 %v482
    %680 = vmatpush2.msra.mxu0 %v481
    %681 = vmatprep.subr.mxu0 %v476
    %682 = vmatpush2.msra.mxu0 %v475
    %683 = vmatprep.subr.mxu0 %v470
    %684 = vmatpush2.msra.mxu0 %v469
    %685 = vmatprep.subr.mxu0 %v464
    %686 = vmatpush2.msra.mxu0 %v463
    %687 = vmatprep.subr.mxu0 %v458
    %688 = vmatpush2.msra.mxu0 %v457
    %689 = vmatprep.subr.mxu0 %v452
    %690 = vmatpush2.msra.mxu0 %v451
    %691 = vmatprep.subr.mxu0 %v446
    %692 = vmatpush2.msra.mxu0 %v445
    %693 = vmatprep.subr.mxu0 %v440
    %694 = vmatpush2.msra.mxu0 %v439
    %695 = vmatprep.subr.mxu0 %v434
    %696 = vmatpush2.msra.mxu0 %v433
    %697 = vmatprep.subr.mxu0 %v428
    %698 = vmatpush2.msra.mxu0 %v427
    %699 = vmatprep.subr.mxu0 %v422
    %700 = vmatpush2.msra.mxu0 %v421
    %701 = vmatprep.subr.mxu0 %v416
    %702 = vmatpush2.msra.mxu0 %v415
    %703 = vmatprep.mubr.f32.mxu0 %v314
    %704 = vmatmul.mubr.f32.gmra.mxu0 %v313
    %v705 = vpop.f32.mrf.mxu0
    %v706 = vadd.f32 %v612, %v705
    %v707 = vpop.f32.mrf.mxu0
    %v708 = vadd.f32 %v616, %v707
    %709 = vmatprep.mubr.f32.mxu0 %v317
    %710 = vmatmul.mubr.f32.gmra.mxu0 %v316
    %v711 = vpop.f32.mrf.mxu0
    %v712 = vadd.f32 %v612, %v711
    %v713 = vpop.f32.mrf.mxu0
    %v714 = vadd.f32 %v616, %v713
    %715 = vdwg.mxu0
    %716 = vmatprep.subr.mxu0 %v602
    %717 = vmatpush1.msra.mxu0 %v601
    %718 = vmatprep.subr.mxu0 %v596
    %719 = vmatpush1.msra.mxu0 %v595
    %720 = vmatprep.subr.mxu0 %v590
    %721 = vmatpush1.msra.mxu0 %v589
    %722 = vmatprep.subr.mxu0 %v584
    %723 = vmatpush1.msra.mxu0 %v583
    %724 = vmatprep.subr.mxu0 %v578
    %725 = vmatpush1.msra.mxu0 %v577
    %726 = vmatprep.subr.mxu0 %v572
    %727 = vmatpush1.msra.mxu0 %v571
    %728 = vmatprep.subr.mxu0 %v566
    %729 = vmatpush1.msra.mxu0 %v565
    %730 = vmatprep.subr.mxu0 %v560
    %731 = vmatpush1.msra.mxu0 %v559
    %732 = vmatprep.subr.mxu0 %v554
    %733 = vmatpush1.msra.mxu0 %v553
    %734 = vmatprep.subr.mxu0 %v548
    %735 = vmatpush1.msra.mxu0 %v547
    %736 = vmatprep.subr.mxu0 %v542
    %737 = vmatpush1.msra.mxu0 %v541
    %738 = vmatprep.subr.mxu0 %v536
    %739 = vmatpush1.msra.mxu0 %v535
    %740 = vmatprep.subr.mxu0 %v530
    %741 = vmatpush1.msra.mxu0 %v529
    %742 = vmatprep.subr.mxu0 %v524
    %743 = vmatpush1.msra.mxu0 %v523
    %744 = vmatprep.subr.mxu0 %v518
    %745 = vmatpush1.msra.mxu0 %v517
    %746 = vmatprep.subr.mxu0 %v512
    %747 = vmatpush1.msra.mxu0 %v511
    %748 = vmatprep.subr.mxu0 0.0
    %749 = vmatpush2.msra.mxu0 0.0
    %750 = vmatprep.subr.mxu0 0.0
    %751 = vmatpush2.msra.mxu0 0.0
    %752 = vmatprep.subr.mxu0 0.0
    %753 = vmatpush2.msra.mxu0 0.0
    %754 = vmatprep.subr.mxu0 0.0
    %755 = vmatpush2.msra.mxu0 0.0
    %756 = vmatprep.subr.mxu0 0.0
    %757 = vmatpush2.msra.mxu0 0.0
    %758 = vmatprep.subr.mxu0 0.0
    %759 = vmatpush2.msra.mxu0 0.0
    %760 = vmatprep.subr.mxu0 0.0
    %761 = vmatpush2.msra.mxu0 0.0
    %762 = vmatprep.subr.mxu0 0.0
    %763 = vmatpush2.msra.mxu0 0.0
    %764 = vmatprep.subr.mxu0 0.0
    %765 = vmatpush2.msra.mxu0 0.0
    %766 = vmatprep.subr.mxu0 0.0
    %767 = vmatpush2.msra.mxu0 0.0
    %768 = vmatprep.subr.mxu0 0.0
    %769 = vmatpush2.msra.mxu0 0.0
    %770 = vmatprep.subr.mxu0 0.0
    %771 = vmatpush2.msra.mxu0 0.0
    %772 = vmatprep.subr.mxu0 0.0
    %773 = vmatpush2.msra.mxu0 0.0
    %774 = vmatprep.subr.mxu0 0.0
    %775 = vmatpush2.msra.mxu0 0.0
    %776 = vmatprep.subr.mxu0 0.0
    %777 = vmatpush2.msra.mxu0 0.0
    %778 = vmatprep.subr.mxu0 0.0
    %779 = vmatpush2.msra.mxu0 0.0
    %780 = vmatprep.mubr.f32.mxu0 0.0
    %781 = vmatmul.mubr.f32.gmra.mxu0 %v315
    %v782 = vpop.f32.mrf.mxu0
    %v783 = vadd.f32 %v706, %v782
    %v784 = vpop.f32.mrf.mxu0
    %v785 = vadd.f32 %v708, %v784
    %786 = vmatprep.mubr.f32.mxu0 0.0
    %787 = vmatmul.mubr.f32.gmra.mxu0 %v318
    %v788 = vpop.f32.mrf.mxu0
    %v789 = vadd.f32 %v712, %v788
    %v790 = vpop.f32.mrf.mxu0
    %v791 = vadd.f32 %v714, %v790
    %792 = vdwg.mxu0
    %793 = vmatprep.subr.mxu0 %v412
    %794 = vmatpush1.msra.mxu0 %v411
    %795 = vmatprep.subr.mxu0 %v406
    %796 = vmatpush1.msra.mxu0 %v405
    %797 = vmatprep.subr.mxu0 %v400
    %798 = vmatpush1.msra.mxu0 %v399
    %799 = vmatprep.subr.mxu0 %v394
    %800 = vmatpush1.msra.mxu0 %v393
    %801 = vmatprep.subr.mxu0 %v388
    %802 = vmatpush1.msra.mxu0 %v387
    %803 = vmatprep.subr.mxu0 %v382
    %804 = vmatpush1.msra.mxu0 %v381
    %805 = vmatprep.subr.mxu0 %v376
    %806 = vmatpush1.msra.mxu0 %v375
    %807 = vmatprep.subr.mxu0 %v370
    %808 = vmatpush1.msra.mxu0 %v369
    %809 = vmatprep.subr.mxu0 %v364
    %810 = vmatpush1.msra.mxu0 %v363
    %811 = vmatprep.subr.mxu0 %v358
    %812 = vmatpush1.msra.mxu0 %v357
    %813 = vmatprep.subr.mxu0 %v352
    %814 = vmatpush1.msra.mxu0 %v351
    %815 = vmatprep.subr.mxu0 %v346
    %816 = vmatpush1.msra.mxu0 %v345
    %817 = vmatprep.subr.mxu0 %v340
    %818 = vmatpush1.msra.mxu0 %v339
    %819 = vmatprep.subr.mxu0 %v334
    %820 = vmatpush1.msra.mxu0 %v333
    %821 = vmatprep.subr.mxu0 %v328
    %822 = vmatpush1.msra.mxu0 %v327
    %823 = vmatprep.subr.mxu0 %v322
    %824 = vmatpush1.msra.mxu0 %v321
    %825 = vmatprep.subr.mxu0 %v508
    %826 = vmatpush2.msra.mxu0 %v507
    %827 = vmatprep.subr.mxu0 %v502
    %828 = vmatpush2.msra.mxu0 %v501
    %829 = vmatprep.subr.mxu0 %v496
    %830 = vmatpush2.msra.mxu0 %v495
    %831 = vmatprep.subr.mxu0 %v490
    %832 = vmatpush2.msra.mxu0 %v489
    %833 = vmatprep.subr.mxu0 %v484
    %834 = vmatpush2.msra.mxu0 %v483
    %835 = vmatprep.subr.mxu0 %v478
    %836 = vmatpush2.msra.mxu0 %v477
    %837 = vmatprep.subr.mxu0 %v472
    %838 = vmatpush2.msra.mxu0 %v471
    %839 = vmatprep.subr.mxu0 %v466
    %840 = vmatpush2.msra.mxu0 %v465
    %841 = vmatprep.subr.mxu0 %v460
    %842 = vmatpush2.msra.mxu0 %v459
    %843 = vmatprep.subr.mxu0 %v454
    %844 = vmatpush2.msra.mxu0 %v453
    %845 = vmatprep.subr.mxu0 %v448
    %846 = vmatpush2.msra.mxu0 %v447
    %847 = vmatprep.subr.mxu0 %v442
    %848 = vmatpush2.msra.mxu0 %v441
    %849 = vmatprep.subr.mxu0 %v436
    %850 = vmatpush2.msra.mxu0 %v435
    %851 = vmatprep.subr.mxu0 %v430
    %852 = vmatpush2.msra.mxu0 %v429
    %853 = vmatprep.subr.mxu0 %v424
    %854 = vmatpush2.msra.mxu0 %v423
    %855 = vmatprep.subr.mxu0 %v418
    %856 = vmatpush2.msra.mxu0 %v417
    %857 = vmatprep.mubr.f32.mxu0 %v314
    %858 = vmatmul.mubr.f32.gmra.mxu0 %v313
    %v859 = vpop.f32.mrf.mxu0
    %v860 = vadd.f32 %v620, %v859
    %v861 = vpop.f32.mrf.mxu0
    %v862 = vadd.f32 %v624, %v861
    %863 = vmatprep.mubr.f32.mxu0 %v317
    %864 = vmatmul.mubr.f32.gmra.mxu0 %v316
    %v865 = vpop.f32.mrf.mxu0
    %v866 = vadd.f32 %v620, %v865
    %v867 = vpop.f32.mrf.mxu0
    %v868 = vadd.f32 %v624, %v867
    %869 = vdwg.mxu0
    %870 = vmatprep.subr.mxu0 %v604
    %871 = vmatpush1.msra.mxu0 %v603
    %872 = vmatprep.subr.mxu0 %v598
    %873 = vmatpush1.msra.mxu0 %v597
    %874 = vmatprep.subr.mxu0 %v592
    %875 = vmatpush1.msra.mxu0 %v591
    %876 = vmatprep.subr.mxu0 %v586
    %877 = vmatpush1.msra.mxu0 %v585
    %878 = vmatprep.subr.mxu0 %v580
    %879 = vmatpush1.msra.mxu0 %v579
    %880 = vmatprep.subr.mxu0 %v574
    %881 = vmatpush1.msra.mxu0 %v573
    %882 = vmatprep.subr.mxu0 %v568
    %883 = vmatpush1.msra.mxu0 %v567
    %884 = vmatprep.subr.mxu0 %v562
    %885 = vmatpush1.msra.mxu0 %v561
    %886 = vmatprep.subr.mxu0 %v556
    %887 = vmatpush1.msra.mxu0 %v555
    %888 = vmatprep.subr.mxu0 %v550
    %889 = vmatpush1.msra.mxu0 %v549
    %890 = vmatprep.subr.mxu0 %v544
    %891 = vmatpush1.msra.mxu0 %v543
    %892 = vmatprep.subr.mxu0 %v538
    %893 = vmatpush1.msra.mxu0 %v537
    %894 = vmatprep.subr.mxu0 %v532
    %895 = vmatpush1.msra.mxu0 %v531
    %896 = vmatprep.subr.mxu0 %v526
    %897 = vmatpush1.msra.mxu0 %v525
    %898 = vmatprep.subr.mxu0 %v520
    %899 = vmatpush1.msra.mxu0 %v519
    %900 = vmatprep.subr.mxu0 %v514
    %901 = vmatpush1.msra.mxu0 %v513
    %902 = vmatprep.subr.mxu0 0.0
    %903 = vmatpush2.msra.mxu0 0.0
    %904 = vmatprep.subr.mxu0 0.0
    %905 = vmatpush2.msra.mxu0 0.0
    %906 = vmatprep.subr.mxu0 0.0
    %907 = vmatpush2.msra.mxu0 0.0
    %908 = vmatprep.subr.mxu0 0.0
    %909 = vmatpush2.msra.mxu0 0.0
    %910 = vmatprep.subr.mxu0 0.0
    %911 = vmatpush2.msra.mxu0 0.0
    %912 = vmatprep.subr.mxu0 0.0
    %913 = vmatpush2.msra.mxu0 0.0
    %914 = vmatprep.subr.mxu0 0.0
    %915 = vmatpush2.msra.mxu0 0.0
    %916 = vmatprep.subr.mxu0 0.0
    %917 = vmatpush2.msra.mxu0 0.0
    %918 = vmatprep.subr.mxu0 0.0
    %919 = vmatpush2.msra.mxu0 0.0
    %920 = vmatprep.subr.mxu0 0.0
    %921 = vmatpush2.msra.mxu0 0.0
    %922 = vmatprep.subr.mxu0 0.0
    %923 = vmatpush2.msra.mxu0 0.0
    %924 = vmatprep.subr.mxu0 0.0
    %925 = vmatpush2.msra.mxu0 0.0
    %926 = vmatprep.subr.mxu0 0.0
    %927 = vmatpush2.msra.mxu0 0.0
    %928 = vmatprep.subr.mxu0 0.0
    %929 = vmatpush2.msra.mxu0 0.0
    %930 = vmatprep.subr.mxu0 0.0
    %931 = vmatpush2.msra.mxu0 0.0
    %932 = vmatprep.subr.mxu0 0.0
    %933 = vmatpush2.msra.mxu0 0.0
    %934 = vmatprep.mubr.f32.mxu0 0.0
    %935 = vmatmul.mubr.f32.gmra.mxu0 %v315
    %v936 = vpop.f32.mrf.mxu0
    %v937 = vadd.f32 %v860, %v936
    %v938 = vpop.f32.mrf.mxu0
    %v939 = vadd.f32 %v862, %v938
    %940 = vmatprep.mubr.f32.mxu0 0.0
    %941 = vmatmul.mubr.f32.gmra.mxu0 %v318
    %v942 = vpop.f32.mrf.mxu0
    %v943 = vadd.f32 %v866, %v942
    %v944 = vpop.f32.mrf.mxu0
    %v945 = vadd.f32 %v868, %v944
    %946 = vdwg.mxu0
    %947 = vmatprep.subr.mxu0 %v414
    %948 = vmatpush1.msra.mxu0 %v413
    %949 = vmatprep.subr.mxu0 %v408
    %950 = vmatpush1.msra.mxu0 %v407
    %951 = vmatprep.subr.mxu0 %v402
    %952 = vmatpush1.msra.mxu0 %v401
    %953 = vmatprep.subr.mxu0 %v396
    %954 = vmatpush1.msra.mxu0 %v395
    %955 = vmatprep.subr.mxu0 %v390
    %956 = vmatpush1.msra.mxu0 %v389
    %957 = vmatprep.subr.mxu0 %v384
    %958 = vmatpush1.msra.mxu0 %v383
    %959 = vmatprep.subr.mxu0 %v378
    %960 = vmatpush1.msra.mxu0 %v377
    %961 = vmatprep.subr.mxu0 %v372
    %962 = vmatpush1.msra.mxu0 %v371
    %963 = vmatprep.subr.mxu0 %v366
    %964 = vmatpush1.msra.mxu0 %v365
    %965 = vmatprep.subr.mxu0 %v360
    %966 = vmatpush1.msra.mxu0 %v359
    %967 = vmatprep.subr.mxu0 %v354
    %968 = vmatpush1.msra.mxu0 %v353
    %969 = vmatprep.subr.mxu0 %v348
    %970 = vmatpush1.msra.mxu0 %v347
    %971 = vmatprep.subr.mxu0 %v342
    %972 = vmatpush1.msra.mxu0 %v341
    %973 = vmatprep.subr.mxu0 %v336
    %974 = vmatpush1.msra.mxu0 %v335
    %975 = vmatprep.subr.mxu0 %v330
    %976 = vmatpush1.msra.mxu0 %v329
    %977 = vmatprep.subr.mxu0 %v324
    %978 = vmatpush1.msra.mxu0 %v323
    %979 = vmatprep.subr.mxu0 %v510
    %980 = vmatpush2.msra.mxu0 %v509
    %981 = vmatprep.subr.mxu0 %v504
    %982 = vmatpush2.msra.mxu0 %v503
    %983 = vmatprep.subr.mxu0 %v498
    %984 = vmatpush2.msra.mxu0 %v497
    %985 = vmatprep.subr.mxu0 %v492
    %986 = vmatpush2.msra.mxu0 %v491
    %987 = vmatprep.subr.mxu0 %v486
    %988 = vmatpush2.msra.mxu0 %v485
    %989 = vmatprep.subr.mxu0 %v480
    %990 = vmatpush2.msra.mxu0 %v479
    %991 = vmatprep.subr.mxu0 %v474
    %992 = vmatpush2.msra.mxu0 %v473
    %993 = vmatprep.subr.mxu0 %v468
    %994 = vmatpush2.msra.mxu0 %v467
    %995 = vmatprep.subr.mxu0 %v462
    %996 = vmatpush2.msra.mxu0 %v461
    %997 = vmatprep.subr.mxu0 %v456
    %998 = vmatpush2.msra.mxu0 %v455
    %999 = vmatprep.subr.mxu0 %v450
    %1000 = vmatpush2.msra.mxu0 %v449
    %1001 = vmatprep.subr.mxu0 %v444
    %1002 = vmatpush2.msra.mxu0 %v443
    %1003 = vmatprep.subr.mxu0 %v438
    %1004 = vmatpush2.msra.mxu0 %v437
    %1005 = vmatprep.subr.mxu0 %v432
    %1006 = vmatpush2.msra.mxu0 %v431
    %1007 = vmatprep.subr.mxu0 %v426
    %1008 = vmatpush2.msra.mxu0 %v425
    %1009 = vmatprep.subr.mxu0 %v420
    %1010 = vmatpush2.msra.mxu0 %v419
    %1011 = vmatprep.mubr.f32.mxu0 %v314
    %1012 = vmatmul.mubr.f32.gmra.mxu0 %v313
    %v1013 = vpop.f32.mrf.mxu0
    %v1014 = vadd.f32 %v628, %v1013
    %v1015 = vpop.f32.mrf.mxu0
    %v1016 = vadd.f32 %v632, %v1015
    %1017 = vmatprep.mubr.f32.mxu0 %v317
    %1018 = vmatmul.mubr.f32.gmra.mxu0 %v316
    %v1019 = vpop.f32.mrf.mxu0
    %v1020 = vadd.f32 %v628, %v1019
    %v1021 = vpop.f32.mrf.mxu0
    %v1022 = vadd.f32 %v632, %v1021
    %1023 = vdwg.mxu0
    %1024 = vmatprep.subr.mxu0 %v606
    %1025 = vmatpush1.msra.mxu0 %v605
    %1026 = vmatprep.subr.mxu0 %v600
    %1027 = vmatpush1.msra.mxu0 %v599
    %1028 = vmatprep.subr.mxu0 %v594
    %1029 = vmatpush1.msra.mxu0 %v593
    %1030 = vmatprep.subr.mxu0 %v588
    %1031 = vmatpush1.msra.mxu0 %v587
    %1032 = vmatprep.subr.mxu0 %v582
    %1033 = vmatpush1.msra.mxu0 %v581
    %1034 = vmatprep.subr.mxu0 %v576
    %1035 = vmatpush1.msra.mxu0 %v575
    %1036 = vmatprep.subr.mxu0 %v570
    %1037 = vmatpush1.msra.mxu0 %v569
    %1038 = vmatprep.subr.mxu0 %v564
    %1039 = vmatpush1.msra.mxu0 %v563
    %1040 = vmatprep.subr.mxu0 %v558
    %1041 = vmatpush1.msra.mxu0 %v557
    %1042 = vmatprep.subr.mxu0 %v552
    %1043 = vmatpush1.msra.mxu0 %v551
    %1044 = vmatprep.subr.mxu0 %v546
    %1045 = vmatpush1.msra.mxu0 %v545
    %1046 = vmatprep.subr.mxu0 %v540
    %1047 = vmatpush1.msra.mxu0 %v539
    %1048 = vmatprep.subr.mxu0 %v534
    %1049 = vmatpush1.msra.mxu0 %v533
    %1050 = vmatprep.subr.mxu0 %v528
    %1051 = vmatpush1.msra.mxu0 %v527
    %1052 = vmatprep.subr.mxu0 %v522
    %1053 = vmatpush1.msra.mxu0 %v521
    %1054 = vmatprep.subr.mxu0 %v516
    %1055 = vmatpush1.msra.mxu0 %v515
    %1056 = vmatprep.subr.mxu0 0.0
    %1057 = vmatpush2.msra.mxu0 0.0
    %1058 = vmatprep.subr.mxu0 0.0
    %1059 = vmatpush2.msra.mxu0 0.0
    %1060 = vmatprep.subr.mxu0 0.0
    %1061 = vmatpush2.msra.mxu0 0.0
    %1062 = vmatprep.subr.mxu0 0.0
    %1063 = vmatpush2.msra.mxu0 0.0
    %1064 = vmatprep.subr.mxu0 0.0
    %1065 = vmatpush2.msra.mxu0 0.0
    %1066 = vmatprep.subr.mxu0 0.0
    %1067 = vmatpush2.msra.mxu0 0.0
    %1068 = vmatprep.subr.mxu0 0.0
    %1069 = vmatpush2.msra.mxu0 0.0
    %1070 = vmatprep.subr.mxu0 0.0
    %1071 = vmatpush2.msra.mxu0 0.0
    %1072 = vmatprep.subr.mxu0 0.0
    %1073 = vmatpush2.msra.mxu0 0.0
    %1074 = vmatprep.subr.mxu0 0.0
    %1075 = vmatpush2.msra.mxu0 0.0
    %1076 = vmatprep.subr.mxu0 0.0
    %1077 = vmatpush2.msra.mxu0 0.0
    %1078 = vmatprep.subr.mxu0 0.0
    %1079 = vmatpush2.msra.mxu0 0.0
    %1080 = vmatprep.subr.mxu0 0.0
    %1081 = vmatpush2.msra.mxu0 0.0
    %1082 = vmatprep.subr.mxu0 0.0
    %1083 = vmatpush2.msra.mxu0 0.0
    %1084 = vmatprep.subr.mxu0 0.0
    %1085 = vmatpush2.msra.mxu0 0.0
    %1086 = vmatprep.subr.mxu0 0.0
    %1087 = vmatpush2.msra.mxu0 0.0
    %1088 = vmatprep.mubr.f32.mxu0 0.0
    %1089 = vmatmul.mubr.f32.gmra.mxu0 %v315
    %v1090 = vpop.f32.mrf.mxu0
    %v1091 = vadd.f32 %v1014, %v1090
    %v1092 = vpop.f32.mrf.mxu0
    %v1093 = vadd.f32 %v1016, %v1092
    %1094 = vmatprep.mubr.f32.mxu0 0.0
    %1095 = vmatmul.mubr.f32.gmra.mxu0 %v318
    %v1096 = vpop.f32.mrf.mxu0
    %v1097 = vadd.f32 %v1020, %v1096
    %v1098 = vpop.f32.mrf.mxu0
    %v1099 = vadd.f32 %v1022, %v1098
    %1100 = vdwg.mxu0
    %v1101 = vmax.f32 %v783, 0.0
    %v1102 = vmax.f32 %v785, 0.0
    %v1103 = vmax.f32 %v937, 0.0
    %v1104 = vmax.f32 %v939, 0.0
    %v1105 = vmax.f32 %v1091, 0.0
    %v1106 = vmax.f32 %v1093, 0.0
    %v1107 = vmax.f32 %v789, 0.0
    %v1108 = vmax.f32 %v791, 0.0
    %v1109 = vmax.f32 %v943, 0.0
    %v1110 = vmax.f32 %v945, 0.0
    %v1111 = vmax.f32 %v1097, 0.0
    %v1112 = vmax.f32 %v1099, 0.0
    %v1113 = vld [vmem:[#allocation10] sm:$0xff]
    %v1114 = vld [vmem:[#allocation10 + $0x8] sm:$0xff]
    %v1115 = vld [vmem:[#allocation10 + $0x10] sm:$0xff]
    %v1116 = vld [vmem:[#allocation10 + $0x18] sm:$0xff]
    %v1117 = vld [vmem:[#allocation10 + $0x20] sm:$0xff]
    %v1118 = vld [vmem:[#allocation10 + $0x28] sm:$0xff]
    %v1119 = vld [vmem:[#allocation10 + $0x30] sm:$0xff]
    %v1120 = vld [vmem:[#allocation10 + $0x38] sm:$0xff]
    %v1121 = vld [vmem:[#allocation10 + $0x40] sm:$0xff]
    %v1122 = vld [vmem:[#allocation10 + $0x48] sm:$0xff]
    %v1123 = vld [vmem:[#allocation10 + $0x50] sm:$0xff]
    %v1124 = vld [vmem:[#allocation10 + $0x58] sm:$0xff]
    %v1125 = vld [vmem:[#allocation10 + $0x60] sm:$0xff]
    %v1126 = vld [vmem:[#allocation10 + $0x68] sm:$0xff]
    %v1127 = vld [vmem:[#allocation10 + $0x70] sm:$0xff]
    %v1128 = vld [vmem:[#allocation10 + $0x78] sm:$0xff]
    %v1129 = vld [vmem:[#allocation10 + $0x80] sm:$0xff]
    %v1130 = vld [vmem:[#allocation10 + $0x88] sm:$0xff]
    %v1131 = vld [vmem:[#allocation10 + $0x90] sm:$0xff]
    %v1132 = vld [vmem:[#allocation10 + $0x98] sm:$0xff]
    %v1133 = vld [vmem:[#allocation10 + $0xa0] sm:$0xff]
    %v1134 = vld [vmem:[#allocation10 + $0xa8] sm:$0xff]
    %v1135 = vld [vmem:[#allocation10 + $0xb0] sm:$0xff]
    %v1136 = vld [vmem:[#allocation10 + $0xb8] sm:$0xff]
    %v1137 = vld [vmem:[#allocation10 + $0xc0] sm:$0xff]
    %v1138 = vld [vmem:[#allocation10 + $0xc8] sm:$0xff]
    %v1139 = vld [vmem:[#allocation10 + $0xd0] sm:$0xff]
    %v1140 = vld [vmem:[#allocation10 + $0xd8] sm:$0xff]
    %v1141 = vld [vmem:[#allocation10 + $0xe0] sm:$0xff]
    %v1142 = vld [vmem:[#allocation10 + $0xe8] sm:$0xff]
    %v1143 = vld [vmem:[#allocation10 + $0xf0] sm:$0xff]
    %v1144 = vld [vmem:[#allocation10 + $0xf8] sm:$0xff]
    %v1145 = vld [vmem:[#allocation10 + $0x100] sm:$0xff]
    %v1146 = vld [vmem:[#allocation10 + $0x108] sm:$0xff]
    %v1147 = vld [vmem:[#allocation10 + $0x110] sm:$0xff]
    %v1148 = vld [vmem:[#allocation10 + $0x118] sm:$0xff]
    %v1149 = vld [vmem:[#allocation10 + $0x120] sm:$0xff]
    %v1150 = vld [vmem:[#allocation10 + $0x128] sm:$0xff]
    %v1151 = vld [vmem:[#allocation10 + $0x130] sm:$0xff]
    %v1152 = vld [vmem:[#allocation10 + $0x138] sm:$0xff]
    %v1153 = vld [vmem:[#allocation10 + $0x140] sm:$0xff]
    %v1154 = vld [vmem:[#allocation10 + $0x148] sm:$0xff]
    %v1155 = vld [vmem:[#allocation10 + $0x150] sm:$0xff]
    %v1156 = vld [vmem:[#allocation10 + $0x158] sm:$0xff]
    %v1157 = vld [vmem:[#allocation10 + $0x160] sm:$0xff]
    %v1158 = vld [vmem:[#allocation10 + $0x168] sm:$0xff]
    %v1159 = vld [vmem:[#allocation10 + $0x170] sm:$0xff]
    %v1160 = vld [vmem:[#allocation10 + $0x178] sm:$0xff]
    %v1161 = vld [vmem:[#allocation10 + $0x180] sm:$0xff]
    %v1162 = vld [vmem:[#allocation10 + $0x188] sm:$0xff]
    %v1163 = vld [vmem:[#allocation10 + $0x190] sm:$0xff]
    %v1164 = vld [vmem:[#allocation10 + $0x198] sm:$0xff]
    %v1165 = vld [vmem:[#allocation10 + $0x1a0] sm:$0xff]
    %v1166 = vld [vmem:[#allocation10 + $0x1a8] sm:$0xff]
    %v1167 = vld [vmem:[#allocation10 + $0x1b0] sm:$0xff]
    %v1168 = vld [vmem:[#allocation10 + $0x1b8] sm:$0xff]
    %v1169 = vld [vmem:[#allocation10 + $0x1c0] sm:$0xff]
    %v1170 = vld [vmem:[#allocation10 + $0x1c8] sm:$0xff]
    %v1171 = vld [vmem:[#allocation10 + $0x1d0] sm:$0xff]
    %v1172 = vld [vmem:[#allocation10 + $0x1d8] sm:$0xff]
    %v1173 = vld [vmem:[#allocation10 + $0x1e0] sm:$0xff]
    %v1174 = vld [vmem:[#allocation10 + $0x1e8] sm:$0xff]
    %v1175 = vld [vmem:[#allocation10 + $0x1f0] sm:$0xff]
    %v1176 = vld [vmem:[#allocation10 + $0x1f8] sm:$0xff]
    %v1177 = vld [vmem:[#allocation10 + $0x200] sm:$0xff]
    %v1178 = vld [vmem:[#allocation10 + $0x208] sm:$0xff]
    %v1179 = vld [vmem:[#allocation10 + $0x210] sm:$0xff]
    %v1180 = vld [vmem:[#allocation10 + $0x218] sm:$0xff]
    %v1181 = vld [vmem:[#allocation10 + $0x220] sm:$0xff]
    %v1182 = vld [vmem:[#allocation10 + $0x228] sm:$0xff]
    %v1183 = vld [vmem:[#allocation10 + $0x230] sm:$0xff]
    %v1184 = vld [vmem:[#allocation10 + $0x238] sm:$0xff]
    %v1185 = vld [vmem:[#allocation10 + $0x240] sm:$0xff]
    %v1186 = vld [vmem:[#allocation10 + $0x248] sm:$0xff]
    %v1187 = vld [vmem:[#allocation10 + $0x250] sm:$0xff]
    %v1188 = vld [vmem:[#allocation10 + $0x258] sm:$0xff]
    %v1189 = vld [vmem:[#allocation10 + $0x260] sm:$0xff]
    %v1190 = vld [vmem:[#allocation10 + $0x268] sm:$0xff]
    %v1191 = vld [vmem:[#allocation10 + $0x270] sm:$0xff]
    %v1192 = vld [vmem:[#allocation10 + $0x278] sm:$0xff]
    %v1193 = vld [vmem:[#allocation10 + $0x280] sm:$0xff]
    %v1194 = vld [vmem:[#allocation10 + $0x288] sm:$0xff]
    %v1195 = vld [vmem:[#allocation10 + $0x290] sm:$0xff]
    %v1196 = vld [vmem:[#allocation10 + $0x298] sm:$0xff]
    %v1197 = vld [vmem:[#allocation10 + $0x2a0] sm:$0xff]
    %v1198 = vld [vmem:[#allocation10 + $0x2a8] sm:$0xff]
    %v1199 = vld [vmem:[#allocation10 + $0x2b0] sm:$0xff]
    %v1200 = vld [vmem:[#allocation10 + $0x2b8] sm:$0xff]
    %v1201 = vld [vmem:[#allocation10 + $0x2c0] sm:$0xff]
    %v1202 = vld [vmem:[#allocation10 + $0x2c8] sm:$0xff]
    %v1203 = vld [vmem:[#allocation10 + $0x2d0] sm:$0xff]
    %v1204 = vld [vmem:[#allocation10 + $0x2d8] sm:$0xff]
    %v1205 = vld [vmem:[#allocation10 + $0x2e0] sm:$0xff]
    %v1206 = vld [vmem:[#allocation10 + $0x2e8] sm:$0xff]
    %v1207 = vld [vmem:[#allocation10 + $0x2f0] sm:$0xff]
    %v1208 = vld [vmem:[#allocation10 + $0x2f8] sm:$0xff]
    %v1209 = vld [vmem:[#allocation11] sm:$0x1]
    %v1211 = vlaneseq
    %v1212 = vshrl.u32 %v1211, 7
    %v1213 = vsub.s32 0, %v1212
    %v1214 = vrot.slane %v1209, %v1213
    %1216 = vmatprep.subr.mxu0 0.0
    %1217 = vmatpush1.msra.mxu0 %v1128
    %1218 = vmatprep.subr.mxu0 0.0
    %1219 = vmatpush1.msra.mxu0 %v1127
    %1220 = vmatprep.subr.mxu0 0.0
    %1221 = vmatpush1.msra.mxu0 %v1126
    %1222 = vmatprep.subr.mxu0 0.0
    %1223 = vmatpush1.msra.mxu0 %v1125
    %1224 = vmatprep.subr.mxu0 0.0
    %1225 = vmatpush1.msra.mxu0 %v1124
    %1226 = vmatprep.subr.mxu0 0.0
    %1227 = vmatpush1.msra.mxu0 %v1123
    %1228 = vmatprep.subr.mxu0 0.0
    %1229 = vmatpush1.msra.mxu0 %v1122
    %1230 = vmatprep.subr.mxu0 0.0
    %1231 = vmatpush1.msra.mxu0 %v1121
    %1232 = vmatprep.subr.mxu0 0.0
    %1233 = vmatpush1.msra.mxu0 %v1120
    %1234 = vmatprep.subr.mxu0 0.0
    %1235 = vmatpush1.msra.mxu0 %v1119
    %1236 = vmatprep.subr.mxu0 0.0
    %1237 = vmatpush1.msra.mxu0 %v1118
    %1238 = vmatprep.subr.mxu0 0.0
    %1239 = vmatpush1.msra.mxu0 %v1117
    %1240 = vmatprep.subr.mxu0 0.0
    %1241 = vmatpush1.msra.mxu0 %v1116
    %1242 = vmatprep.subr.mxu0 0.0
    %1243 = vmatpush1.msra.mxu0 %v1115
    %1244 = vmatprep.subr.mxu0 0.0
    %1245 = vmatpush1.msra.mxu0 %v1114
    %1246 = vmatprep.subr.mxu0 0.0
    %1247 = vmatpush1.msra.mxu0 %v1113
    %1248 = vmatprep.subr.mxu0 0.0
    %1249 = vmatpush2.msra.mxu0 %v1144
    %1250 = vmatprep.subr.mxu0 0.0
    %1251 = vmatpush2.msra.mxu0 %v1143
    %1252 = vmatprep.subr.mxu0 0.0
    %1253 = vmatpush2.msra.mxu0 %v1142
    %1254 = vmatprep.subr.mxu0 0.0
    %1255 = vmatpush2.msra.mxu0 %v1141
    %1256 = vmatprep.subr.mxu0 0.0
    %1257 = vmatpush2.msra.mxu0 %v1140
    %1258 = vmatprep.subr.mxu0 0.0
    %1259 = vmatpush2.msra.mxu0 %v1139
    %1260 = vmatprep.subr.mxu0 0.0
    %1261 = vmatpush2.msra.mxu0 %v1138
    %1262 = vmatprep.subr.mxu0 0.0
    %1263 = vmatpush2.msra.mxu0 %v1137
    %1264 = vmatprep.subr.mxu0 0.0
    %1265 = vmatpush2.msra.mxu0 %v1136
    %1266 = vmatprep.subr.mxu0 0.0
    %1267 = vmatpush2.msra.mxu0 %v1135
    %1268 = vmatprep.subr.mxu0 0.0
    %1269 = vmatpush2.msra.mxu0 %v1134
    %1270 = vmatprep.subr.mxu0 0.0
    %1271 = vmatpush2.msra.mxu0 %v1133
    %1272 = vmatprep.subr.mxu0 0.0
    %1273 = vmatpush2.msra.mxu0 %v1132
    %1274 = vmatprep.subr.mxu0 0.0
    %1275 = vmatpush2.msra.mxu0 %v1131
    %1276 = vmatprep.subr.mxu0 0.0
    %1277 = vmatpush2.msra.mxu0 %v1130
    %1278 = vmatprep.subr.mxu0 0.0
    %1279 = vmatpush2.msra.mxu0 %v1129
    %1280 = vmatprep.mubr.f32.mxu0 %v1102
    %1281 = vmatmul.mubr.f32.gmra.mxu0 %v1101
    %v1282 = vpop.f32.mrf.mxu0
    %v1283 = vadd.f32 %v1214, %v1282
    %v1284 = vpop.f32.mrf.mxu0
    %1285 = vmatprep.mubr.f32.mxu0 %v1108
    %1286 = vmatmul.mubr.f32.gmra.mxu0 %v1107
    %v1287 = vpop.f32.mrf.mxu0
    %v1288 = vadd.f32 %v1214, %v1287
    %v1289 = vpop.f32.mrf.mxu0
    %1290 = vdwg.mxu0
    %1291 = vmatprep.subr.mxu0 0.0
    %1292 = vmatpush1.msra.mxu0 %v1160
    %1293 = vmatprep.subr.mxu0 0.0
    %1294 = vmatpush1.msra.mxu0 %v1159
    %1295 = vmatprep.subr.mxu0 0.0
    %1296 = vmatpush1.msra.mxu0 %v1158
    %1297 = vmatprep.subr.mxu0 0.0
    %1298 = vmatpush1.msra.mxu0 %v1157
    %1299 = vmatprep.subr.mxu0 0.0
    %1300 = vmatpush1.msra.mxu0 %v1156
    %1301 = vmatprep.subr.mxu0 0.0
    %1302 = vmatpush1.msra.mxu0 %v1155
    %1303 = vmatprep.subr.mxu0 0.0
    %1304 = vmatpush1.msra.mxu0 %v1154
    %1305 = vmatprep.subr.mxu0 0.0
    %1306 = vmatpush1.msra.mxu0 %v1153
    %1307 = vmatprep.subr.mxu0 0.0
    %1308 = vmatpush1.msra.mxu0 %v1152
    %1309 = vmatprep.subr.mxu0 0.0
    %1310 = vmatpush1.msra.mxu0 %v1151
    %1311 = vmatprep.subr.mxu0 0.0
    %1312 = vmatpush1.msra.mxu0 %v1150
    %1313 = vmatprep.subr.mxu0 0.0
    %1314 = vmatpush1.msra.mxu0 %v1149
    %1315 = vmatprep.subr.mxu0 0.0
    %1316 = vmatpush1.msra.mxu0 %v1148
    %1317 = vmatprep.subr.mxu0 0.0
    %1318 = vmatpush1.msra.mxu0 %v1147
    %1319 = vmatprep.subr.mxu0 0.0
    %1320 = vmatpush1.msra.mxu0 %v1146
    %1321 = vmatprep.subr.mxu0 0.0
    %1322 = vmatpush1.msra.mxu0 %v1145
    %1323 = vmatprep.subr.mxu0 0.0
    %1324 = vmatpush2.msra.mxu0 %v1176
    %1325 = vmatprep.subr.mxu0 0.0
    %1326 = vmatpush2.msra.mxu0 %v1175
    %1327 = vmatprep.subr.mxu0 0.0
    %1328 = vmatpush2.msra.mxu0 %v1174
    %1329 = vmatprep.subr.mxu0 0.0
    %1330 = vmatpush2.msra.mxu0 %v1173
    %1331 = vmatprep.subr.mxu0 0.0
    %1332 = vmatpush2.msra.mxu0 %v1172
    %1333 = vmatprep.subr.mxu0 0.0
    %1334 = vmatpush2.msra.mxu0 %v1171
    %1335 = vmatprep.subr.mxu0 0.0
    %1336 = vmatpush2.msra.mxu0 %v1170
    %1337 = vmatprep.subr.mxu0 0.0
    %1338 = vmatpush2.msra.mxu0 %v1169
    %1339 = vmatprep.subr.mxu0 0.0
    %1340 = vmatpush2.msra.mxu0 %v1168
    %1341 = vmatprep.subr.mxu0 0.0
    %1342 = vmatpush2.msra.mxu0 %v1167
    %1343 = vmatprep.subr.mxu0 0.0
    %1344 = vmatpush2.msra.mxu0 %v1166
    %1345 = vmatprep.subr.mxu0 0.0
    %1346 = vmatpush2.msra.mxu0 %v1165
    %1347 = vmatprep.subr.mxu0 0.0
    %1348 = vmatpush2.msra.mxu0 %v1164
    %1349 = vmatprep.subr.mxu0 0.0
    %1350 = vmatpush2.msra.mxu0 %v1163
    %1351 = vmatprep.subr.mxu0 0.0
    %1352 = vmatpush2.msra.mxu0 %v1162
    %1353 = vmatprep.subr.mxu0 0.0
    %1354 = vmatpush2.msra.mxu0 %v1161
    %1355 = vmatprep.mubr.f32.mxu0 %v1104
    %1356 = vmatmul.mubr.f32.gmra.mxu0 %v1103
    %v1357 = vpop.f32.mrf.mxu0
    %v1358 = vadd.f32 %v1283, %v1357
    %v1359 = vpop.f32.mrf.mxu0
    %1360 = vmatprep.mubr.f32.mxu0 %v1110
    %1361 = vmatmul.mubr.f32.gmra.mxu0 %v1109
    %v1362 = vpop.f32.mrf.mxu0
    %v1363 = vadd.f32 %v1288, %v1362
    %v1364 = vpop.f32.mrf.mxu0
    %1365 = vdwg.mxu0
    %1366 = vmatprep.subr.mxu0 0.0
    %1367 = vmatpush1.msra.mxu0 %v1192
    %1368 = vmatprep.subr.mxu0 0.0
    %1369 = vmatpush1.msra.mxu0 %v1191
    %1370 = vmatprep.subr.mxu0 0.0
    %1371 = vmatpush1.msra.mxu0 %v1190
    %1372 = vmatprep.subr.mxu0 0.0
    %1373 = vmatpush1.msra.mxu0 %v1189
    %1374 = vmatprep.subr.mxu0 0.0
    %1375 = vmatpush1.msra.mxu0 %v1188
    %1376 = vmatprep.subr.mxu0 0.0
    %1377 = vmatpush1.msra.mxu0 %v1187
    %1378 = vmatprep.subr.mxu0 0.0
    %1379 = vmatpush1.msra.mxu0 %v1186
    %1380 = vmatprep.subr.mxu0 0.0
    %1381 = vmatpush1.msra.mxu0 %v1185
    %1382 = vmatprep.subr.mxu0 0.0
    %1383 = vmatpush1.msra.mxu0 %v1184
    %1384 = vmatprep.subr.mxu0 0.0
    %1385 = vmatpush1.msra.mxu0 %v1183
    %1386 = vmatprep.subr.mxu0 0.0
    %1387 = vmatpush1.msra.mxu0 %v1182
    %1388 = vmatprep.subr.mxu0 0.0
    %1389 = vmatpush1.msra.mxu0 %v1181
    %1390 = vmatprep.subr.mxu0 0.0
    %1391 = vmatpush1.msra.mxu0 %v1180
    %1392 = vmatprep.subr.mxu0 0.0
    %1393 = vmatpush1.msra.mxu0 %v1179
    %1394 = vmatprep.subr.mxu0 0.0
    %1395 = vmatpush1.msra.mxu0 %v1178
    %1396 = vmatprep.subr.mxu0 0.0
    %1397 = vmatpush1.msra.mxu0 %v1177
    %1398 = vmatprep.subr.mxu0 0.0
    %1399 = vmatpush2.msra.mxu0 %v1208
    %1400 = vmatprep.subr.mxu0 0.0
    %1401 = vmatpush2.msra.mxu0 %v1207
    %1402 = vmatprep.subr.mxu0 0.0
    %1403 = vmatpush2.msra.mxu0 %v1206
    %1404 = vmatprep.subr.mxu0 0.0
    %1405 = vmatpush2.msra.mxu0 %v1205
    %1406 = vmatprep.subr.mxu0 0.0
    %1407 = vmatpush2.msra.mxu0 %v1204
    %1408 = vmatprep.subr.mxu0 0.0
    %1409 = vmatpush2.msra.mxu0 %v1203
    %1410 = vmatprep.subr.mxu0 0.0
    %1411 = vmatpush2.msra.mxu0 %v1202
    %1412 = vmatprep.subr.mxu0 0.0
    %1413 = vmatpush2.msra.mxu0 %v1201
    %1414 = vmatprep.subr.mxu0 0.0
    %1415 = vmatpush2.msra.mxu0 %v1200
    %1416 = vmatprep.subr.mxu0 0.0
    %1417 = vmatpush2.msra.mxu0 %v1199
    %1418 = vmatprep.subr.mxu0 0.0
    %1419 = vmatpush2.msra.mxu0 %v1198
    %1420 = vmatprep.subr.mxu0 0.0
    %1421 = vmatpush2.msra.mxu0 %v1197
    %1422 = vmatprep.subr.mxu0 0.0
    %1423 = vmatpush2.msra.mxu0 %v1196
    %1424 = vmatprep.subr.mxu0 0.0
    %1425 = vmatpush2.msra.mxu0 %v1195
    %1426 = vmatprep.subr.mxu0 0.0
    %1427 = vmatpush2.msra.mxu0 %v1194
    %1428 = vmatprep.subr.mxu0 0.0
    %1429 = vmatpush2.msra.mxu0 %v1193
    %1430 = vmatprep.mubr.f32.mxu0 %v1106
    %1431 = vmatmul.mubr.f32.gmra.mxu0 %v1105
    %v1432 = vpop.f32.mrf.mxu0
    %v1433 = vadd.f32 %v1358, %v1432
    %v1434 = vpop.f32.mrf.mxu0
    %1435 = vmatprep.mubr.f32.mxu0 %v1112
    %1436 = vmatmul.mubr.f32.gmra.mxu0 %v1111
    %v1437 = vpop.f32.mrf.mxu0
    %v1438 = vadd.f32 %v1363, %v1437
    %v1439 = vpop.f32.mrf.mxu0
    %1440 = vdwg.mxu0
    %v1441 = vmax.f32 %v1433, 0.0
    %v1442 = vmax.f32 %v1438, 0.0
    %v1443 = vld [vmem:[#allocation13] sm:$0xff]
    %v1444 = vld [vmem:[#allocation13 + $0x8] sm:$0xff]
    %v1445 = vld [vmem:[#allocation13 + $0x10] sm:$0xff]
    %v1446 = vld [vmem:[#allocation13 + $0x18] sm:$0xff]
    %v1447 = vld [vmem:[#allocation13 + $0x20] sm:$0xff]
    %v1448 = vld [vmem:[#allocation13 + $0x28] sm:$0xff]
    %v1449 = vld [vmem:[#allocation13 + $0x30] sm:$0xff]
    %v1450 = vld [vmem:[#allocation13 + $0x38] sm:$0xff]
    %v1451 = vld [vmem:[#allocation13 + $0x40] sm:$0xff]
    %v1452 = vld [vmem:[#allocation13 + $0x48] sm:$0xff]
    %v1453 = vld [vmem:[#allocation13 + $0x50] sm:$0xff]
    %v1454 = vld [vmem:[#allocation13 + $0x58] sm:$0xff]
    %v1455 = vld [vmem:[#allocation13 + $0x60] sm:$0xff]
    %v1456 = vld [vmem:[#allocation13 + $0x68] sm:$0xff]
    %v1457 = vld [vmem:[#allocation13 + $0x70] sm:$0xff]
    %v1458 = vld [vmem:[#allocation13 + $0x78] sm:$0xff]
    %v1459 = vld [vmem:[#allocation14] sm:$0x1]
    %v1461 = vlaneseq
    %v1462 = vshrl.u32 %v1461, 7
    %v1463 = vsub.s32 0, %v1462
    %v1464 = vrot.slane %v1459, %v1463
    %1466 = vmatprep.subr.mxu0 0.0
    %1467 = vmatpush1.msra.mxu0 %v1458
    %1468 = vmatprep.subr.mxu0 0.0
    %1469 = vmatpush1.msra.mxu0 %v1457
    %1470 = vmatprep.subr.mxu0 0.0
    %1471 = vmatpush1.msra.mxu0 %v1456
    %1472 = vmatprep.subr.mxu0 0.0
    %1473 = vmatpush1.msra.mxu0 %v1455
    %1474 = vmatprep.subr.mxu0 0.0
    %1475 = vmatpush1.msra.mxu0 %v1454
    %1476 = vmatprep.subr.mxu0 0.0
    %1477 = vmatpush1.msra.mxu0 %v1453
    %1478 = vmatprep.subr.mxu0 0.0
    %1479 = vmatpush1.msra.mxu0 %v1452
    %1480 = vmatprep.subr.mxu0 0.0
    %1481 = vmatpush1.msra.mxu0 %v1451
    %1482 = vmatprep.subr.mxu0 0.0
    %1483 = vmatpush1.msra.mxu0 %v1450
    %1484 = vmatprep.subr.mxu0 0.0
    %1485 = vmatpush1.msra.mxu0 %v1449
    %1486 = vmatprep.subr.mxu0 0.0
    %1487 = vmatpush1.msra.mxu0 %v1448
    %1488 = vmatprep.subr.mxu0 0.0
    %1489 = vmatpush1.msra.mxu0 %v1447
    %1490 = vmatprep.subr.mxu0 0.0
    %1491 = vmatpush1.msra.mxu0 %v1446
    %1492 = vmatprep.subr.mxu0 0.0
    %1493 = vmatpush1.msra.mxu0 %v1445
    %1494 = vmatprep.subr.mxu0 0.0
    %1495 = vmatpush1.msra.mxu0 %v1444
    %1496 = vmatprep.subr.mxu0 0.0
    %1497 = vmatpush1.msra.mxu0 %v1443
    %1498 = vmatprep.subr.mxu0 0.0
    %1499 = vmatpush2.msra.mxu0 0.0
    %1500 = vmatprep.subr.mxu0 0.0
    %1501 = vmatpush2.msra.mxu0 0.0
    %1502 = vmatprep.subr.mxu0 0.0
    %1503 = vmatpush2.msra.mxu0 0.0
    %1504 = vmatprep.subr.mxu0 0.0
    %1505 = vmatpush2.msra.mxu0 0.0
    %1506 = vmatprep.subr.mxu0 0.0
    %1507 = vmatpush2.msra.mxu0 0.0
    %1508 = vmatprep.subr.mxu0 0.0
    %1509 = vmatpush2.msra.mxu0 0.0
    %1510 = vmatprep.subr.mxu0 0.0
    %1511 = vmatpush2.msra.mxu0 0.0
    %1512 = vmatprep.subr.mxu0 0.0
    %1513 = vmatpush2.msra.mxu0 0.0
    %1514 = vmatprep.subr.mxu0 0.0
    %1515 = vmatpush2.msra.mxu0 0.0
    %1516 = vmatprep.subr.mxu0 0.0
    %1517 = vmatpush2.msra.mxu0 0.0
    %1518 = vmatprep.subr.mxu0 0.0
    %1519 = vmatpush2.msra.mxu0 0.0
    %1520 = vmatprep.subr.mxu0 0.0
    %1521 = vmatpush2.msra.mxu0 0.0
    %1522 = vmatprep.subr.mxu0 0.0
    %1523 = vmatpush2.msra.mxu0 0.0
    %1524 = vmatprep.subr.mxu0 0.0
    %1525 = vmatpush2.msra.mxu0 0.0
    %1526 = vmatprep.subr.mxu0 0.0
    %1527 = vmatpush2.msra.mxu0 0.0
    %1528 = vmatprep.subr.mxu0 0.0
    %1529 = vmatpush2.msra.mxu0 0.0
    %1530 = vmatprep.mubr.f32.mxu0 0.0
    %1531 = vmatmul.mubr.f32.gmra.mxu0 %v1441
    %v1532 = vpop.f32.mrf.mxu0
    %v1533 = vadd.f32 %v1464, %v1532
    %v1534 = vpop.f32.mrf.mxu0
    %1535 = vmatprep.mubr.f32.mxu0 0.0
    %1536 = vmatmul.mubr.f32.gmra.mxu0 %v1442
    %v1537 = vpop.f32.mrf.mxu0
    %v1538 = vadd.f32 %v1464, %v1537
    %v1539 = vpop.f32.mrf.mxu0
    %1540 = vdwg.mxu0
    %1541 = vst [vmem:[#allocation16] sm:$0xff] %v1533
    %1542 = vst [vmem:[#allocation16 + $0x8] sm:$0xff] %v1538
    // Predicated region
    $region70: #{tpu_custom_call.1} parent=1 // pred_check
      _
    $region71: #{tpu_custom_call.1} parent=1 // pred_check_branch
      %1544 = sbr.rel (0) target = $region73
    $region72: #{tpu_custom_call.1} parent=1 // pred_region
      %s1546 = ssub.s32 256, 256
      %1547 = vsyncadd [#allocation4], %s1546
      %s1548 = sshll.u32 [#allocation16], 4
      %s1549 = int_to_ptr.vmem [resolvable:$true] %s1548
      %1554 = dma.vmem_to_hbm [thread:$0]  %s1549, 256, %s9, [#allocation4], 128, 128, 8
    $region73: #{tpu_custom_call.1} parent=1 // pred_fallthru
      _
    // Predicated region
    $region74: #{tpu_custom_call.1} parent=1 // pred_check
      _
    $region75: #{tpu_custom_call.1} parent=1 // pred_check_branch
      %1556 = sbr.rel (0) target = $region77
    $region76: #{tpu_custom_call.1} parent=1 // pred_region
      %1557 = dma.done [#allocation4], 256
    $region77: #{tpu_custom_call.1} parent=1 // pred_fallthru
      _
    %1558 = vsyncpa [#allocation3], 1
    %1559 = vsyncpa [#allocation6], 1
    %1560 = vsyncpa [#allocation9], 1
    %1561 = vsyncpa [#allocation12], 1
    %1562 = vsyncpa [#allocation15], 1
    %1563 = vsyncpa [#allocation4], 1

</llo_original>
